<compile_context>
chip_gen: v5e
topology: v5e:2x2
jax: 0.10.0
libtpu: 0.0.40
codegen_flags: <defaults>
</compile_context>

<pallas_src>
import functools
import math

import jax
import jax.numpy as jnp
from jax.experimental import pallas as pl
from jax.experimental.pallas import tpu as pltpu


# ----------------------------------------------------------------------------
# small helpers (all matmuls: bf16 operands, f32 accumulation on the MXU)
# ----------------------------------------------------------------------------
def _mm(a, b):
    return jnp.dot(a.astype(jnp.bfloat16), b.astype(jnp.bfloat16),
                   preferred_element_type=jnp.float32)


def _mm_tt(a, b):
    # contract axis 0 of both operands: a^T @ b, transpose folded into the MXU op
    return jax.lax.dot_general(a.astype(jnp.bfloat16), b.astype(jnp.bfloat16),
                               (((0,), (0,)), ((), ())),
                               preferred_element_type=jnp.float32)


def _mm_nn(a, b):
    # contract axis 1 of both operands: a @ b^T, transpose folded into the MXU op
    return jax.lax.dot_general(a.astype(jnp.bfloat16), b.astype(jnp.bfloat16),
                               (((1,), (1,)), ((), ())),
                               preferred_element_type=jnp.float32)


def _layernorm(x, g, b, eps=1e-5):
    m = jnp.mean(x, axis=-1, keepdims=True)
    v = jnp.mean((x - m) ** 2, axis=-1, keepdims=True)
    return (x - m) * jax.lax.rsqrt(v + eps) * g + b


# ----------------------------------------------------------------------------
# Fused forward kernel (one grid step per batch element; everything in VMEM)
# ----------------------------------------------------------------------------
def _fused_kernel(pts_ref, prm_ref, w3t_ref, wh_ref, wd_ref, bcol_ref, brow_ref,
                  masks_ref, iou_ref, *, H, D, Hm, Hi, M, P):
    pts = pts_ref[0]                                   # (3, N)  feature-major coords
    prm = prm_ref[0]                                   # (P, 3)  token-major prompt coords

    # --- static slices out of the packed weight blocks ---
    pe1_wT = w3t_ref[0:H, :]                           # (H, 3)
    kpos_wT = w3t_ref[H:H + D, :]                      # (D, 3) == (pe_w @ wk)^T (folded)

    pe2_w = wh_ref[:, 0:D]                             # (H, D)
    pr2_w = wh_ref[:, D:2 * D]                         # (H, D)
    wm2 = wh_ref[:, 2 * D:3 * D]                       # (Hm, D)

    wq = wd_ref[:, 0:D]                                # (D, D)
    wk = wd_ref[:, D:2 * D]
    wv = wd_ref[:, 2 * D:3 * D]
    wo = wd_ref[:, 3 * D:4 * D]
    wmask = wd_ref[:, 4 * D:5 * D]
    wm1 = wd_ref[:, 5 * D:5 * D + Hm]                  # (D, Hm)
    wi1 = wd_ref[:, 5 * D + Hm:5 * D + Hm + Hi]        # (D, Hi)
    wi2 = wd_ref[:, 5 * D + Hm + Hi:]                  # (Hi, 128) zero-padded iou head

    pe1_b = bcol_ref[0:H, :]                           # (H, 1)
    pe2_b = bcol_ref[H:H + D, :]                       # (D, 1)

    tok_learned = brow_ref[0:8, 0:D]                   # (8, D) [mask_tokens; iou_token; 0]
    pr1_w = brow_ref[8:11, 0:H]                        # (3, H)
    pr1_b = brow_ref[11:12, 0:H]
    pr2_b = brow_ref[12:13, 0:D]
    bm1 = brow_ref[13:14, 0:Hm]
    bm2 = brow_ref[14:15, 0:D]
    bi1 = brow_ref[15:16, 0:Hi]
    bi2 = brow_ref[16:17, :]                           # (1, 128) zero-padded
    ln1_g = brow_ref[17:18, 0:D]
    ln1_b = brow_ref[18:19, 0:D]
    ln2_g = brow_ref[19:20, 0:D]
    ln2_b = brow_ref[20:21, 0:D]

    # --- PointEncoder: per-point MLP 3 -> H -> D, feature-major (channels x N) ---
    # K=3 contraction as three VPU broadcast-FMAs (no wasted MXU pass).
    h_pt = jnp.maximum(
        pe1_wT[:, 0:1] * pts[0:1, :]
        + pe1_wT[:, 1:2] * pts[1:2, :]
        + pe1_wT[:, 2:3] * pts[2:3, :]
        + pe1_b, 0.0)                                  # (H, N)
    src = _mm_tt(pe2_w, h_pt) + pe2_b                  # (D, N)

    # --- PromptEncoder: per-prompt MLP 3 -> H -> D (token-major, tiny) ---
    h_pr = jnp.maximum(
        prm[:, 0:1] * pr1_w[0:1, :]
        + prm[:, 1:2] * pr1_w[1:2, :]
        + prm[:, 2:3] * pr1_w[2:3, :]
        + pr1_b, 0.0)                                  # (P, H)
    sparse = _mm(h_pr, pr2_w) + pr2_b                  # (P, D)

    # --- token assembly: [sparse prompts | mask tokens | iou token | zero pad] -> 16 rows ---
    tokens = jnp.concatenate([sparse, tok_learned], axis=0)   # (P+8, D), sublane-aligned

    # --- cross-attention: tokens attend to point features ---
    # key positional term folded into kpos_wT = (pe_w @ wk)^T
    kpos = (kpos_wT[:, 0:1] * pts[0:1, :]
            + kpos_wT[:, 1:2] * pts[1:2, :]
            + kpos_wT[:, 2:3] * pts[2:3, :])           # (D, N)
    k = _mm_tt(wk, src) + kpos                         # (D, N)
    v = _mm_tt(wv, src)                                # (D, N)
    q = _mm(tokens, wq)                                # (T, D)

    scores = _mm(q, k) * (1.0 / math.sqrt(D))          # (T, N)  lane-dense
    scores = scores - jnp.max(scores, axis=-1, keepdims=True)
    p = jnp.exp(scores)
    attn = p * pl.reciprocal(jnp.sum(p, axis=-1, keepdims=True), approx=True)   # (T, N)

    attn_out = _mm(_mm_nn(attn, v), wo)                # (T, D)
    tokens = _layernorm(tokens + attn_out, ln1_g, ln1_b)

    # --- token MLP block ---
    hm = jnp.maximum(_mm(tokens, wm1) + bm1, 0.0)      # (T, Hm)
    tokens = _layernorm(tokens + _mm(hm, wm2) + bm2, ln2_g, ln2_b)

    # --- heads ---
    # forward() only consumes masks[:, 0, :] -> compute only mask channel 0.
    # TODO(synk): if all M mask channels are needed, slice tokens[P:P+M] here instead.
    m0 = tokens[P:P + 1, :]                            # mask token 0   (1, D)
    hyper = _mm(m0, wmask)                             # (1, D)
    mask0 = _mm(hyper, src)                            # (1, N)  lane-dense output

    iou_tok = tokens[P + M:P + M + 1, :]               # iou token      (1, D)
    ih = jnp.maximum(_mm(iou_tok, wi1) + bi1, 0.0)     # (1, Hi)
    iou = _mm(ih, wi2) + bi2                           # (1, 128), first M lanes valid

    masks_ref[0] = mask0.astype(masks_ref.dtype)
    iou_ref[0] = iou.astype(iou_ref.dtype)


# ----------------------------------------------------------------------------
# Wrapper: pack weights once, single pallas_call over the batch
# ----------------------------------------------------------------------------
def point_seg_transformer_forward(params, pts, prompts, num_mask_tokens=4):
    B, N, _ = pts.shape
    P = prompts.shape[1]                 # best when P % 8 == 0 (aligned token concat)
    H = params["pe1_w"].shape[1]
    D = params["pe2_w"].shape[1]
    Hm = params["wm1"].shape[1]
    Hi = params["wi1"].shape[1]
    M = num_mask_tokens
    T = P + 8                            # padded token count
    f32 = jnp.float32

    assert Hm == H, "wm2 packed alongside pe2_w/pr2_w requires Hm == H"
    assert Hi == D, "wi2 packed alongside the (D, .) weights requires Hi == D"
    assert H <= 128 and Hm <= 128 and Hi <= 128 and D <= 128 and M <= 128

    # feature-major point coords: (B, 3, N) so N rides the 128-lane axis in-kernel
    pts_t = jnp.transpose(pts, (0, 2, 1))

    # ---- pack the ~28 tiny tensors into 5 constant arrays (one DMA each) ----
    # fold the key positional projection:  (src + pts@pe_w) @ wk = src@wk + pts@(pe_w@wk)
    w_kpos = params["pe_w"] @ params["wk"]                                   # (3, D)
    w3t = jnp.concatenate([params["pe1_w"].T, w_kpos.T], axis=0).astype(f32)  # (H+D, 3)

    wh = jnp.concatenate([params["pe2_w"], params["pr2_w"], params["wm2"]],
                         axis=1).astype(f32)                                 # (H, 3D)

    wi2_pad = jnp.pad(params["wi2"], ((0, 0), (0, 128 - M)))                 # (Hi, 128)
    wd = jnp.concatenate(
        [params["wq"], params["wk"], params["wv"], params["wo"], params["wmask"],
         params["wm1"], params["wi1"], wi2_pad], axis=1).astype(f32)         # (D, 5D+Hm+Hi+128)

    bcol = jnp.concatenate([params["pe1_b"].reshape(H, 1),
                            params["pe2_b"].reshape(D, 1)], axis=0).astype(f32)   # (H+D, 1)

    def row128(vec):
        v = jnp.asarray(vec, f32).reshape(1, -1)
        return jnp.pad(v, ((0, 0), (0, 128 - v.shape[1])))

    tok_learned = jnp.zeros((8, D), f32)
    tok_learned = tok_learned.at[:M].set(params["mask_tokens"].astype(f32))
    tok_learned = tok_learned.at[M].set(params["iou_token"].reshape(D).astype(f32))

    brow = jnp.concatenate(
        [jnp.pad(tok_learned, ((0, 0), (0, 128 - D))),                       # rows  0:8
         jnp.pad(params["pr1_w"].astype(f32), ((0, 0), (0, 128 - H))),       # rows  8:11
         row128(params["pr1_b"]), row128(params["pr2_b"]),                   # rows 11,12
         row128(params["bm1"]), row128(params["bm2"]),                       # rows 13,14
         row128(params["bi1"]), row128(params["bi2"]),                       # rows 15,16
         row128(params["ln1_g"]), row128(params["ln1_b"]),                   # rows 17,18
         row128(params["ln2_g"]), row128(params["ln2_b"])], axis=0)          # rows 19,20

    kernel = functools.partial(_fused_kernel, H=H, D=D, Hm=Hm, Hi=Hi, M=M, P=P)

    # constant index maps => weight blocks fetched once, never re-DMA'd per grid step
    in_specs = [
        pl.BlockSpec((1, 3, N), lambda b: (b, 0, 0)),
        pl.BlockSpec((1, P, 3), lambda b: (b, 0, 0)),
        pl.BlockSpec(w3t.shape, lambda b: (0, 0)),
        pl.BlockSpec(wh.shape, lambda b: (0, 0)),
        pl.BlockSpec(wd.shape, lambda b: (0, 0)),
        pl.BlockSpec(bcol.shape, lambda b: (0, 0)),
        pl.BlockSpec(brow.shape, lambda b: (0, 0)),
    ]
    out_specs = (
        pl.BlockSpec((1, 1, N), lambda b: (b, 0, 0)),      # mask channel 0, lane-dense
        pl.BlockSpec((1, 1, 128), lambda b: (b, 0, 0)),    # iou row padded to 128 lanes
    )
    out_shape = (
        jax.ShapeDtypeStruct((B, 1, N), f32),
        jax.ShapeDtypeStruct((B, 1, 128), f32),
    )

    # advisory cost estimate so XLA schedules around the call sanely
    flops_per_b = (
        2 * N * 3 * H + 2 * N * H * D              # point encoder
        + 2 * P * 3 * H + 2 * P * H * D            # prompt encoder
        + 2 * N * 3 * D                            # folded key positional term
        + 2 * 2 * N * D * D + 2 * T * D * D        # k, v, q projections
        + 2 * T * N * D + 2 * T * N * D            # scores, attn @ v
        + 2 * T * D * D                            # output projection
        + 2 * T * D * Hm + 2 * T * Hm * D          # token MLP
        + 2 * D * D + 2 * D * N                    # hypernet + mask channel 0
        + 2 * D * Hi + 2 * Hi * 128                # iou head
    )
    bytes_accessed = 4 * int(pts_t.size + prompts.size + w3t.size + wh.size
                             + wd.size + bcol.size + brow.size + B * N + B * 128)
    cost = pl.CostEstimate(flops=int(B * flops_per_b),
                           transcendentals=int(B * (T * N + T)),
                           bytes_accessed=bytes_accessed)

    masks, iou = pl.pallas_call(
        kernel,
        out_shape=out_shape,
        grid=(B,),
        in_specs=in_specs,
        out_specs=out_specs,
        compiler_params=pltpu.CompilerParams(dimension_semantics=("parallel",)),
        cost_estimate=cost,
    )(pts_t, prompts, w3t, wh, wd, bcol, brow)

    # forward(): first mask channel and iou predictions
    return masks[:, 0, :], iou[:, 0, :M]


# ----------------------------------------------------------------------------
# Parameter construction (deterministic, synthetic)
# ----------------------------------------------------------------------------
def init_params(key, D=32, H=64, Hm=64, Hi=32, M=4):
    ks = jax.random.split(key, 20)
    s = 0.02

    def w(k, shape):
        return (s * jax.random.normal(k, shape)).astype(jnp.float32)

    return {
        # point encoder MLP (3 -> H -> D)
        "pe1_w": w(ks[0], (3, H)), "pe1_b": jnp.zeros((1, H), jnp.float32),
        "pe2_w": w(ks[1], (H, D)), "pe2_b": jnp.zeros((1, D), jnp.float32),
        # prompt encoder MLP (3 -> H -> D)
        "pr1_w": w(ks[2], (3, H)), "pr1_b": jnp.zeros((1, H), jnp.float32),
        "pr2_w": w(ks[3], (H, D)), "pr2_b": jnp.zeros((1, D), jnp.float32),
        # learned tokens
        "iou_token": w(ks[4], (1, D)),
        "mask_tokens": w(ks[5], (M, D)),
        # mask decoder
        "pe_w": w(ks[6], (3, D)),
        "wq": w(ks[7], (D, D)), "wk": w(ks[8], (D, D)),
        "wv": w(ks[9], (D, D)), "wo": w(ks[10], (D, D)),
        "ln1_g": jnp.ones((1, D), jnp.float32), "ln1_b": jnp.zeros((1, D), jnp.float32),
        "wm1": w(ks[11], (D, Hm)), "bm1": jnp.zeros((1, Hm), jnp.float32),
        "wm2": w(ks[12], (Hm, D)), "bm2": jnp.zeros((1, D), jnp.float32),
        "ln2_g": jnp.ones((1, D), jnp.float32), "ln2_b": jnp.zeros((1, D), jnp.float32),
        "wmask": w(ks[13], (D, D)),
        "wi1": w(ks[14], (D, Hi)), "bi1": jnp.zeros((1, Hi), jnp.float32),
        "wi2": w(ks[15], (Hi, M)), "bi2": jnp.zeros((1, M), jnp.float32),
    }


if __name__ == "__main__":
    B, N, P = 2, 128, 8
    D, M = 32, 4

    key = jax.random.PRNGKey(0)
    k_pts, k_prm, k_par = jax.random.split(key, 3)

    pts = jax.random.normal(k_pts, (B, N, 3), dtype=jnp.float32)
    prompts = jax.random.normal(k_prm, (B, P, 3), dtype=jnp.float32)
    params = init_params(k_par, D=D, M=M)

    masks, iou_pred = point_seg_transformer_forward(params, pts, prompts, num_mask_tokens=M)
    masks = jax.block_until_ready(masks)
    iou_pred = jax.block_until_ready(iou_pred)

    assert masks.shape == (B, N), masks.shape
    assert iou_pred.shape == (B, M), iou_pred.shape
    assert jnp.all(jnp.isfinite(masks)) and jnp.all(jnp.isfinite(iou_pred))
    print("KERNEL_OK")
</pallas_src>

<mosaic_0001>
module attributes {stable_mosaic.version = 11 : i64} {
  func.func @_fused_kernel(%arg0: i32, %arg1: memref<1x3x128xf32, #tpu.memory_space<vmem>>, %arg2: memref<1x8x3xf32, #tpu.memory_space<vmem>>, %arg3: memref<96x3xf32, #tpu.memory_space<vmem>>, %arg4: memref<64x96xf32, #tpu.memory_space<vmem>>, %arg5: memref<32x384xf32, #tpu.memory_space<vmem>>, %arg6: memref<96x1xf32, #tpu.memory_space<vmem>>, %arg7: memref<21x128xf32, #tpu.memory_space<vmem>>, %arg8: memref<1x1x128xf32, #tpu.memory_space<vmem>>, %arg9: memref<1x1x128xf32, #tpu.memory_space<vmem>>) attributes {dimension_semantics = [#tpu.dimension_semantics<parallel>], iteration_bounds = array<i64: 2>, scalar_prefetch = 0 : i64, scratch_operands = 0 : i64, tpu.core_type = #tpu.core_type<tc>, window_params = [{transform_indices = @transform_0, window_bounds = array<i64: 1, 3, 128>}, {transform_indices = @transform_1, window_bounds = array<i64: 1, 8, 3>}, {pipeline_mode = #tpu.pipeline_mode<synchronous>, transform_indices = @transform_2, window_bounds = array<i64: 96, 3>}, {pipeline_mode = #tpu.pipeline_mode<synchronous>, transform_indices = @transform_3, window_bounds = array<i64: 64, 96>}, {pipeline_mode = #tpu.pipeline_mode<synchronous>, transform_indices = @transform_4, window_bounds = array<i64: 32, 384>}, {pipeline_mode = #tpu.pipeline_mode<synchronous>, transform_indices = @transform_5, window_bounds = array<i64: 96, 1>}, {pipeline_mode = #tpu.pipeline_mode<synchronous>, transform_indices = @transform_6, window_bounds = array<i64: 21, 128>}, {transform_indices = @transform_7, window_bounds = array<i64: 1, 1, 128>}, {transform_indices = @transform_8, window_bounds = array<i64: 1, 1, 128>}]} {
    %c0 = arith.constant 0 : index
    %c0_0 = arith.constant 0 : index
    %c0_1 = arith.constant 0 : index
    %0 = vector.load %arg1[%c0, %c0_0, %c0_1] : memref<1x3x128xf32, #tpu.memory_space<vmem>>, vector<1x3x128xf32>
    %1 = vector.shape_cast %0 : vector<1x3x128xf32> to vector<3x128xf32>
    %c0_2 = arith.constant 0 : index
    %c0_3 = arith.constant 0 : index
    %c0_4 = arith.constant 0 : index
    %2 = vector.load %arg2[%c0_2, %c0_3, %c0_4] : memref<1x8x3xf32, #tpu.memory_space<vmem>>, vector<1x8x3xf32>
    %3 = vector.shape_cast %2 : vector<1x8x3xf32> to vector<8x3xf32>
    %c0_5 = arith.constant 0 : index
    %c0_6 = arith.constant 0 : index
    %4 = vector.load %arg3[%c0_5, %c0_6] : memref<96x3xf32, #tpu.memory_space<vmem>>, vector<64x3xf32>
    %c64 = arith.constant 64 : index
    %c0_7 = arith.constant 0 : index
    %5 = vector.load %arg3[%c64, %c0_7] : memref<96x3xf32, #tpu.memory_space<vmem>>, vector<32x3xf32>
    %c0_8 = arith.constant 0 : index
    %c0_9 = arith.constant 0 : index
    %6 = vector.load %arg4[%c0_8, %c0_9] : memref<64x96xf32, #tpu.memory_space<vmem>>, vector<64x32xf32>
    %c0_10 = arith.constant 0 : index
    %c32 = arith.constant 32 : index
    %7 = vector.load %arg4[%c0_10, %c32] : memref<64x96xf32, #tpu.memory_space<vmem>>, vector<64x32xf32>
    %c0_11 = arith.constant 0 : index
    %c64_12 = arith.constant 64 : index
    %8 = vector.load %arg4[%c0_11, %c64_12] : memref<64x96xf32, #tpu.memory_space<vmem>>, vector<64x32xf32>
    %c0_13 = arith.constant 0 : index
    %c0_14 = arith.constant 0 : index
    %9 = vector.load %arg5[%c0_13, %c0_14] : memref<32x384xf32, #tpu.memory_space<vmem>>, vector<32x32xf32>
    %c0_15 = arith.constant 0 : index
    %c32_16 = arith.constant 32 : index
    %10 = vector.load %arg5[%c0_15, %c32_16] : memref<32x384xf32, #tpu.memory_space<vmem>>, vector<32x32xf32>
    %c0_17 = arith.constant 0 : index
    %c64_18 = arith.constant 64 : index
    %11 = vector.load %arg5[%c0_17, %c64_18] : memref<32x384xf32, #tpu.memory_space<vmem>>, vector<32x32xf32>
    %c0_19 = arith.constant 0 : index
    %c96 = arith.constant 96 : index
    %12 = vector.load %arg5[%c0_19, %c96] : memref<32x384xf32, #tpu.memory_space<vmem>>, vector<32x32xf32>
    %c0_20 = arith.constant 0 : index
    %c128 = arith.constant 128 : index
    %13 = vector.load %arg5[%c0_20, %c128] : memref<32x384xf32, #tpu.memory_space<vmem>>, vector<32x32xf32>
    %c0_21 = arith.constant 0 : index
    %c160 = arith.constant 160 : index
    %14 = vector.load %arg5[%c0_21, %c160] : memref<32x384xf32, #tpu.memory_space<vmem>>, vector<32x64xf32>
    %c0_22 = arith.constant 0 : index
    %c224 = arith.constant 224 : index
    %15 = vector.load %arg5[%c0_22, %c224] : memref<32x384xf32, #tpu.memory_space<vmem>>, vector<32x32xf32>
    %c0_23 = arith.constant 0 : index
    %c256 = arith.constant 256 : index
    %16 = vector.load %arg5[%c0_23, %c256] : memref<32x384xf32, #tpu.memory_space<vmem>>, vector<32x128xf32>
    %c0_24 = arith.constant 0 : index
    %c0_25 = arith.constant 0 : index
    %17 = vector.load %arg6[%c0_24, %c0_25] : memref<96x1xf32, #tpu.memory_space<vmem>>, vector<64x1xf32>
    %c64_26 = arith.constant 64 : index
    %c0_27 = arith.constant 0 : index
    %18 = vector.load %arg6[%c64_26, %c0_27] : memref<96x1xf32, #tpu.memory_space<vmem>>, vector<32x1xf32>
    %c0_28 = arith.constant 0 : index
    %c0_29 = arith.constant 0 : index
    %19 = vector.load %arg7[%c0_28, %c0_29] : memref<21x128xf32, #tpu.memory_space<vmem>>, vector<8x32xf32>
    %c8 = arith.constant 8 : index
    %c0_30 = arith.constant 0 : index
    %20 = vector.load %arg7[%c8, %c0_30] : memref<21x128xf32, #tpu.memory_space<vmem>>, vector<3x64xf32>
    %c11 = arith.constant 11 : index
    %c0_31 = arith.constant 0 : index
    %21 = vector.load %arg7[%c11, %c0_31] : memref<21x128xf32, #tpu.memory_space<vmem>>, vector<1x64xf32>
    %c12 = arith.constant 12 : index
    %c0_32 = arith.constant 0 : index
    %22 = vector.load %arg7[%c12, %c0_32] : memref<21x128xf32, #tpu.memory_space<vmem>>, vector<1x32xf32>
    %c13 = arith.constant 13 : index
    %c0_33 = arith.constant 0 : index
    %23 = vector.load %arg7[%c13, %c0_33] : memref<21x128xf32, #tpu.memory_space<vmem>>, vector<1x64xf32>
    %c14 = arith.constant 14 : index
    %c0_34 = arith.constant 0 : index
    %24 = vector.load %arg7[%c14, %c0_34] : memref<21x128xf32, #tpu.memory_space<vmem>>, vector<1x32xf32>
    %c15 = arith.constant 15 : index
    %c0_35 = arith.constant 0 : index
    %25 = vector.load %arg7[%c15, %c0_35] : memref<21x128xf32, #tpu.memory_space<vmem>>, vector<1x32xf32>
    %c16 = arith.constant 16 : index
    %c0_36 = arith.constant 0 : index
    %26 = vector.load %arg7[%c16, %c0_36] : memref<21x128xf32, #tpu.memory_space<vmem>>, vector<1x128xf32>
    %c17 = arith.constant 17 : index
    %c0_37 = arith.constant 0 : index
    %27 = vector.load %arg7[%c17, %c0_37] : memref<21x128xf32, #tpu.memory_space<vmem>>, vector<1x32xf32>
    %c18 = arith.constant 18 : index
    %c0_38 = arith.constant 0 : index
    %28 = vector.load %arg7[%c18, %c0_38] : memref<21x128xf32, #tpu.memory_space<vmem>>, vector<1x32xf32>
    %c19 = arith.constant 19 : index
    %c0_39 = arith.constant 0 : index
    %29 = vector.load %arg7[%c19, %c0_39] : memref<21x128xf32, #tpu.memory_space<vmem>>, vector<1x32xf32>
    %c20 = arith.constant 20 : index
    %c0_40 = arith.constant 0 : index
    %30 = vector.load %arg7[%c20, %c0_40] : memref<21x128xf32, #tpu.memory_space<vmem>>, vector<1x32xf32>
    %31 = vector.extract_strided_slice %4 {offsets = [0, 0], sizes = [64, 1], strides = [1, 1]} : vector<64x3xf32> to vector<64x1xf32>
    %32 = vector.extract_strided_slice %1 {offsets = [0, 0], sizes = [1, 128], strides = [1, 1]} : vector<3x128xf32> to vector<1x128xf32>
    %33 = vector.broadcast %31 : vector<64x1xf32> to vector<64x128xf32>
    %34 = vector.broadcast %32 : vector<1x128xf32> to vector<64x128xf32>
    %35 = arith.mulf %33, %34 : vector<64x128xf32>
    %36 = vector.extract_strided_slice %4 {offsets = [0, 1], sizes = [64, 1], strides = [1, 1]} : vector<64x3xf32> to vector<64x1xf32>
    %37 = vector.extract_strided_slice %1 {offsets = [1, 0], sizes = [1, 128], strides = [1, 1]} : vector<3x128xf32> to vector<1x128xf32>
    %38 = vector.broadcast %36 : vector<64x1xf32> to vector<64x128xf32>
    %39 = vector.broadcast %37 : vector<1x128xf32> to vector<64x128xf32>
    %40 = arith.mulf %38, %39 : vector<64x128xf32>
    %41 = arith.addf %35, %40 : vector<64x128xf32>
    %42 = vector.extract_strided_slice %4 {offsets = [0, 2], sizes = [64, 1], strides = [1, 1]} : vector<64x3xf32> to vector<64x1xf32>
    %43 = vector.extract_strided_slice %1 {offsets = [2, 0], sizes = [1, 128], strides = [1, 1]} : vector<3x128xf32> to vector<1x128xf32>
    %44 = vector.broadcast %42 : vector<64x1xf32> to vector<64x128xf32>
    %45 = vector.broadcast %43 : vector<1x128xf32> to vector<64x128xf32>
    %46 = arith.mulf %44, %45 : vector<64x128xf32>
    %47 = arith.addf %41, %46 : vector<64x128xf32>
    %48 = vector.broadcast %17 : vector<64x1xf32> to vector<64x128xf32>
    %49 = arith.addf %47, %48 : vector<64x128xf32>
    %cst = arith.constant 0.000000e+00 : f32
    %50 = vector.broadcast %cst : f32 to vector<64x128xf32>
    %51 = arith.maximumf %49, %50 : vector<64x128xf32>
    %52 = arith.truncf %6 : vector<64x32xf32> to vector<64x32xbf16>
    %53 = arith.truncf %51 : vector<64x128xf32> to vector<64x128xbf16>
    %cst_41 = arith.constant dense<0.000000e+00> : vector<32x128xf32>
    %54 = tpu.matmul %52, %53, %cst_41 {dimension_numbers = #tpu.dot_dimension_numbers<[0], [0], [1], [1], [0, 1, 1, 1], [], []>} : vector<64x32xbf16>, vector<64x128xbf16>, vector<32x128xf32> -> vector<32x128xf32>
    %55 = vector.broadcast %18 : vector<32x1xf32> to vector<32x128xf32>
    %56 = arith.addf %54, %55 : vector<32x128xf32>
    %57 = vector.extract_strided_slice %3 {offsets = [0, 0], sizes = [8, 1], strides = [1, 1]} : vector<8x3xf32> to vector<8x1xf32>
    %58 = vector.extract_strided_slice %20 {offsets = [0, 0], sizes = [1, 64], strides = [1, 1]} : vector<3x64xf32> to vector<1x64xf32>
    %59 = vector.broadcast %57 : vector<8x1xf32> to vector<8x64xf32>
    %60 = vector.broadcast %58 : vector<1x64xf32> to vector<8x64xf32>
    %61 = arith.mulf %59, %60 : vector<8x64xf32>
    %62 = vector.extract_strided_slice %3 {offsets = [0, 1], sizes = [8, 1], strides = [1, 1]} : vector<8x3xf32> to vector<8x1xf32>
    %63 = vector.extract_strided_slice %20 {offsets = [1, 0], sizes = [1, 64], strides = [1, 1]} : vector<3x64xf32> to vector<1x64xf32>
    %64 = vector.broadcast %62 : vector<8x1xf32> to vector<8x64xf32>
    %65 = vector.broadcast %63 : vector<1x64xf32> to vector<8x64xf32>
    %66 = arith.mulf %64, %65 : vector<8x64xf32>
    %67 = arith.addf %61, %66 : vector<8x64xf32>
    %68 = vector.extract_strided_slice %3 {offsets = [0, 2], sizes = [8, 1], strides = [1, 1]} : vector<8x3xf32> to vector<8x1xf32>
    %69 = vector.extract_strided_slice %20 {offsets = [2, 0], sizes = [1, 64], strides = [1, 1]} : vector<3x64xf32> to vector<1x64xf32>
    %70 = vector.broadcast %68 : vector<8x1xf32> to vector<8x64xf32>
    %71 = vector.broadcast %69 : vector<1x64xf32> to vector<8x64xf32>
    %72 = arith.mulf %70, %71 : vector<8x64xf32>
    %73 = arith.addf %67, %72 : vector<8x64xf32>
    %74 = vector.broadcast %21 : vector<1x64xf32> to vector<8x64xf32>
    %75 = arith.addf %73, %74 : vector<8x64xf32>
    %cst_42 = arith.constant 0.000000e+00 : f32
    %76 = vector.broadcast %cst_42 : f32 to vector<8x64xf32>
    %77 = arith.maximumf %75, %76 : vector<8x64xf32>
    %78 = arith.truncf %77 : vector<8x64xf32> to vector<8x64xbf16>
    %79 = arith.truncf %7 : vector<64x32xf32> to vector<64x32xbf16>
    %cst_43 = arith.constant dense<0.000000e+00> : vector<8x32xf32>
    %80 = tpu.matmul %78, %79, %cst_43 {dimension_numbers = #tpu.dot_dimension_numbers<[1], [0], [0], [1], [0, 0, 1, 1], [], []>} : vector<8x64xbf16>, vector<64x32xbf16>, vector<8x32xf32> -> vector<8x32xf32>
    %81 = vector.broadcast %22 : vector<1x32xf32> to vector<8x32xf32>
    %82 = arith.addf %80, %81 : vector<8x32xf32>
    %83 = tpu.concatenate %82, %19 in 0 : vector<8x32xf32>, vector<8x32xf32> -> vector<16x32xf32>
    %84 = vector.extract_strided_slice %5 {offsets = [0, 0], sizes = [32, 1], strides = [1, 1]} : vector<32x3xf32> to vector<32x1xf32>
    %85 = vector.extract_strided_slice %1 {offsets = [0, 0], sizes = [1, 128], strides = [1, 1]} : vector<3x128xf32> to vector<1x128xf32>
    %86 = vector.broadcast %84 : vector<32x1xf32> to vector<32x128xf32>
    %87 = vector.broadcast %85 : vector<1x128xf32> to vector<32x128xf32>
    %88 = arith.mulf %86, %87 : vector<32x128xf32>
    %89 = vector.extract_strided_slice %5 {offsets = [0, 1], sizes = [32, 1], strides = [1, 1]} : vector<32x3xf32> to vector<32x1xf32>
    %90 = vector.extract_strided_slice %1 {offsets = [1, 0], sizes = [1, 128], strides = [1, 1]} : vector<3x128xf32> to vector<1x128xf32>
    %91 = vector.broadcast %89 : vector<32x1xf32> to vector<32x128xf32>
    %92 = vector.broadcast %90 : vector<1x128xf32> to vector<32x128xf32>
    %93 = arith.mulf %91, %92 : vector<32x128xf32>
    %94 = arith.addf %88, %93 : vector<32x128xf32>
    %95 = vector.extract_strided_slice %5 {offsets = [0, 2], sizes = [32, 1], strides = [1, 1]} : vector<32x3xf32> to vector<32x1xf32>
    %96 = vector.extract_strided_slice %1 {offsets = [2, 0], sizes = [1, 128], strides = [1, 1]} : vector<3x128xf32> to vector<1x128xf32>
    %97 = vector.broadcast %95 : vector<32x1xf32> to vector<32x128xf32>
    %98 = vector.broadcast %96 : vector<1x128xf32> to vector<32x128xf32>
    %99 = arith.mulf %97, %98 : vector<32x128xf32>
    %100 = arith.addf %94, %99 : vector<32x128xf32>
    %101 = arith.truncf %10 : vector<32x32xf32> to vector<32x32xbf16>
    %102 = arith.truncf %56 : vector<32x128xf32> to vector<32x128xbf16>
    %cst_44 = arith.constant dense<0.000000e+00> : vector<32x128xf32>
    %103 = tpu.matmul %101, %102, %cst_44 {dimension_numbers = #tpu.dot_dimension_numbers<[0], [0], [1], [1], [0, 1, 1, 1], [], []>} : vector<32x32xbf16>, vector<32x128xbf16>, vector<32x128xf32> -> vector<32x128xf32>
    %104 = arith.addf %103, %100 : vector<32x128xf32>
    %105 = arith.truncf %11 : vector<32x32xf32> to vector<32x32xbf16>
    %106 = arith.truncf %56 : vector<32x128xf32> to vector<32x128xbf16>
    %cst_45 = arith.constant dense<0.000000e+00> : vector<32x128xf32>
    %107 = tpu.matmul %105, %106, %cst_45 {dimension_numbers = #tpu.dot_dimension_numbers<[0], [0], [1], [1], [0, 1, 1, 1], [], []>} : vector<32x32xbf16>, vector<32x128xbf16>, vector<32x128xf32> -> vector<32x128xf32>
    %108 = arith.truncf %83 : vector<16x32xf32> to vector<16x32xbf16>
    %109 = arith.truncf %9 : vector<32x32xf32> to vector<32x32xbf16>
    %cst_46 = arith.constant dense<0.000000e+00> : vector<16x32xf32>
    %110 = tpu.matmul %108, %109, %cst_46 {dimension_numbers = #tpu.dot_dimension_numbers<[1], [0], [0], [1], [0, 0, 1, 1], [], []>} : vector<16x32xbf16>, vector<32x32xbf16>, vector<16x32xf32> -> vector<16x32xf32>
    %111 = arith.truncf %110 : vector<16x32xf32> to vector<16x32xbf16>
    %112 = arith.truncf %104 : vector<32x128xf32> to vector<32x128xbf16>
    %cst_47 = arith.constant dense<0.000000e+00> : vector<16x128xf32>
    %113 = tpu.matmul %111, %112, %cst_47 {dimension_numbers = #tpu.dot_dimension_numbers<[1], [0], [0], [1], [0, 0, 1, 1], [], []>} : vector<16x32xbf16>, vector<32x128xbf16>, vector<16x128xf32> -> vector<16x128xf32>
    %cst_48 = arith.constant 0.176776692 : f32
    %114 = vector.broadcast %cst_48 : f32 to vector<16x128xf32>
    %115 = arith.mulf %113, %114 : vector<16x128xf32>
    %cst_49 = arith.constant dense<0xFF800000> : vector<16xf32>
    %116 = vector.multi_reduction <maximumf>, %115, %cst_49 [1] : vector<16x128xf32> to vector<16xf32>
    %117 = vector.shape_cast %116 : vector<16xf32> to vector<16x1xf32>
    %118 = vector.broadcast %117 : vector<16x1xf32> to vector<16x128xf32>
    %119 = arith.subf %115, %118 : vector<16x128xf32>
    %120 = math.exp %119 : vector<16x128xf32>
    %cst_50 = arith.constant dense<0.000000e+00> : vector<16xf32>
    %121 = vector.multi_reduction <add>, %120, %cst_50 [1] : vector<16x128xf32> to vector<16xf32>
    %122 = vector.shape_cast %121 : vector<16xf32> to vector<16x1xf32>
    %123 = tpu.reciprocal %122 {approx = true} : vector<16x1xf32> -> vector<16x1xf32>
    %124 = vector.broadcast %123 : vector<16x1xf32> to vector<16x128xf32>
    %125 = arith.mulf %120, %124 : vector<16x128xf32>
    %126 = arith.truncf %125 : vector<16x128xf32> to vector<16x128xbf16>
    %127 = arith.truncf %107 : vector<32x128xf32> to vector<32x128xbf16>
    %cst_51 = arith.constant dense<0.000000e+00> : vector<16x32xf32>
    %128 = tpu.matmul %126, %127, %cst_51 {dimension_numbers = #tpu.dot_dimension_numbers<[1], [1], [0], [0], [0, 0, 1, 0], [], []>} : vector<16x128xbf16>, vector<32x128xbf16>, vector<16x32xf32> -> vector<16x32xf32>
    %129 = arith.truncf %128 : vector<16x32xf32> to vector<16x32xbf16>
    %130 = arith.truncf %12 : vector<32x32xf32> to vector<32x32xbf16>
    %cst_52 = arith.constant dense<0.000000e+00> : vector<16x32xf32>
    %131 = tpu.matmul %129, %130, %cst_52 {dimension_numbers = #tpu.dot_dimension_numbers<[1], [0], [0], [1], [0, 0, 1, 1], [], []>} : vector<16x32xbf16>, vector<32x32xbf16>, vector<16x32xf32> -> vector<16x32xf32>
    %132 = arith.addf %83, %131 : vector<16x32xf32>
    %cst_53 = arith.constant dense<0.000000e+00> : vector<16xf32>
    %133 = vector.multi_reduction <add>, %132, %cst_53 [1] : vector<16x32xf32> to vector<16xf32>
    %134 = vector.shape_cast %133 : vector<16xf32> to vector<16x1xf32>
    %cst_54 = arith.constant 3.200000e+01 : f32
    %135 = vector.broadcast %cst_54 : f32 to vector<16x1xf32>
    %136 = arith.divf %134, %135 : vector<16x1xf32>
    %137 = vector.broadcast %136 : vector<16x1xf32> to vector<16x32xf32>
    %138 = arith.subf %132, %137 : vector<16x32xf32>
    %139 = arith.mulf %138, %138 : vector<16x32xf32>
    %cst_55 = arith.constant dense<0.000000e+00> : vector<16xf32>
    %140 = vector.multi_reduction <add>, %139, %cst_55 [1] : vector<16x32xf32> to vector<16xf32>
    %141 = vector.shape_cast %140 : vector<16xf32> to vector<16x1xf32>
    %cst_56 = arith.constant 3.200000e+01 : f32
    %142 = vector.broadcast %cst_56 : f32 to vector<16x1xf32>
    %143 = arith.divf %141, %142 : vector<16x1xf32>
    %144 = vector.broadcast %136 : vector<16x1xf32> to vector<16x32xf32>
    %145 = arith.subf %132, %144 : vector<16x32xf32>
    %cst_57 = arith.constant 9.99999974E-6 : f32
    %146 = vector.broadcast %cst_57 : f32 to vector<16x1xf32>
    %147 = arith.addf %143, %146 : vector<16x1xf32>
    %148 = math.rsqrt %147 : vector<16x1xf32>
    %149 = vector.broadcast %148 : vector<16x1xf32> to vector<16x32xf32>
    %150 = arith.mulf %145, %149 : vector<16x32xf32>
    %151 = vector.broadcast %27 : vector<1x32xf32> to vector<16x32xf32>
    %152 = arith.mulf %150, %151 : vector<16x32xf32>
    %153 = vector.broadcast %28 : vector<1x32xf32> to vector<16x32xf32>
    %154 = arith.addf %152, %153 : vector<16x32xf32>
    %155 = arith.truncf %154 : vector<16x32xf32> to vector<16x32xbf16>
    %156 = arith.truncf %14 : vector<32x64xf32> to vector<32x64xbf16>
    %cst_58 = arith.constant dense<0.000000e+00> : vector<16x64xf32>
    %157 = tpu.matmul %155, %156, %cst_58 {dimension_numbers = #tpu.dot_dimension_numbers<[1], [0], [0], [1], [0, 0, 1, 1], [], []>} : vector<16x32xbf16>, vector<32x64xbf16>, vector<16x64xf32> -> vector<16x64xf32>
    %158 = vector.broadcast %23 : vector<1x64xf32> to vector<16x64xf32>
    %159 = arith.addf %157, %158 : vector<16x64xf32>
    %cst_59 = arith.constant 0.000000e+00 : f32
    %160 = vector.broadcast %cst_59 : f32 to vector<16x64xf32>
    %161 = arith.maximumf %159, %160 : vector<16x64xf32>
    %162 = arith.truncf %161 : vector<16x64xf32> to vector<16x64xbf16>
    %163 = arith.truncf %8 : vector<64x32xf32> to vector<64x32xbf16>
    %cst_60 = arith.constant dense<0.000000e+00> : vector<16x32xf32>
    %164 = tpu.matmul %162, %163, %cst_60 {dimension_numbers = #tpu.dot_dimension_numbers<[1], [0], [0], [1], [0, 0, 1, 1], [], []>} : vector<16x64xbf16>, vector<64x32xbf16>, vector<16x32xf32> -> vector<16x32xf32>
    %165 = arith.addf %154, %164 : vector<16x32xf32>
    %166 = vector.broadcast %24 : vector<1x32xf32> to vector<16x32xf32>
    %167 = arith.addf %165, %166 : vector<16x32xf32>
    %cst_61 = arith.constant dense<0.000000e+00> : vector<16xf32>
    %168 = vector.multi_reduction <add>, %167, %cst_61 [1] : vector<16x32xf32> to vector<16xf32>
    %169 = vector.shape_cast %168 : vector<16xf32> to vector<16x1xf32>
    %cst_62 = arith.constant 3.200000e+01 : f32
    %170 = vector.broadcast %cst_62 : f32 to vector<16x1xf32>
    %171 = arith.divf %169, %170 : vector<16x1xf32>
    %172 = vector.broadcast %171 : vector<16x1xf32> to vector<16x32xf32>
    %173 = arith.subf %167, %172 : vector<16x32xf32>
    %174 = arith.mulf %173, %173 : vector<16x32xf32>
    %cst_63 = arith.constant dense<0.000000e+00> : vector<16xf32>
    %175 = vector.multi_reduction <add>, %174, %cst_63 [1] : vector<16x32xf32> to vector<16xf32>
    %176 = vector.shape_cast %175 : vector<16xf32> to vector<16x1xf32>
    %cst_64 = arith.constant 3.200000e+01 : f32
    %177 = vector.broadcast %cst_64 : f32 to vector<16x1xf32>
    %178 = arith.divf %176, %177 : vector<16x1xf32>
    %179 = vector.broadcast %171 : vector<16x1xf32> to vector<16x32xf32>
    %180 = arith.subf %167, %179 : vector<16x32xf32>
    %cst_65 = arith.constant 9.99999974E-6 : f32
    %181 = vector.broadcast %cst_65 : f32 to vector<16x1xf32>
    %182 = arith.addf %178, %181 : vector<16x1xf32>
    %183 = math.rsqrt %182 : vector<16x1xf32>
    %184 = vector.broadcast %183 : vector<16x1xf32> to vector<16x32xf32>
    %185 = arith.mulf %180, %184 : vector<16x32xf32>
    %186 = vector.broadcast %29 : vector<1x32xf32> to vector<16x32xf32>
    %187 = arith.mulf %185, %186 : vector<16x32xf32>
    %188 = vector.broadcast %30 : vector<1x32xf32> to vector<16x32xf32>
    %189 = arith.addf %187, %188 : vector<16x32xf32>
    %190 = vector.extract_strided_slice %189 {offsets = [8, 0], sizes = [1, 32], strides = [1, 1]} : vector<16x32xf32> to vector<1x32xf32>
    %191 = arith.truncf %190 : vector<1x32xf32> to vector<1x32xbf16>
    %192 = arith.truncf %13 : vector<32x32xf32> to vector<32x32xbf16>
    %cst_66 = arith.constant dense<0.000000e+00> : vector<1x32xf32>
    %193 = tpu.matmul %191, %192, %cst_66 {dimension_numbers = #tpu.dot_dimension_numbers<[1], [0], [0], [1], [0, 0, 1, 1], [], []>} : vector<1x32xbf16>, vector<32x32xbf16>, vector<1x32xf32> -> vector<1x32xf32>
    %194 = arith.truncf %193 : vector<1x32xf32> to vector<1x32xbf16>
    %195 = arith.truncf %56 : vector<32x128xf32> to vector<32x128xbf16>
    %cst_67 = arith.constant dense<0.000000e+00> : vector<1x128xf32>
    %196 = tpu.matmul %194, %195, %cst_67 {dimension_numbers = #tpu.dot_dimension_numbers<[1], [0], [0], [1], [0, 0, 1, 1], [], []>} : vector<1x32xbf16>, vector<32x128xbf16>, vector<1x128xf32> -> vector<1x128xf32>
    %197 = vector.extract_strided_slice %189 {offsets = [12, 0], sizes = [1, 32], strides = [1, 1]} : vector<16x32xf32> to vector<1x32xf32>
    %198 = arith.truncf %197 : vector<1x32xf32> to vector<1x32xbf16>
    %199 = arith.truncf %15 : vector<32x32xf32> to vector<32x32xbf16>
    %cst_68 = arith.constant dense<0.000000e+00> : vector<1x32xf32>
    %200 = tpu.matmul %198, %199, %cst_68 {dimension_numbers = #tpu.dot_dimension_numbers<[1], [0], [0], [1], [0, 0, 1, 1], [], []>} : vector<1x32xbf16>, vector<32x32xbf16>, vector<1x32xf32> -> vector<1x32xf32>
    %201 = arith.addf %200, %25 : vector<1x32xf32>
    %cst_69 = arith.constant 0.000000e+00 : f32
    %202 = vector.broadcast %cst_69 : f32 to vector<1x32xf32>
    %203 = arith.maximumf %201, %202 : vector<1x32xf32>
    %204 = arith.truncf %203 : vector<1x32xf32> to vector<1x32xbf16>
    %205 = arith.truncf %16 : vector<32x128xf32> to vector<32x128xbf16>
    %cst_70 = arith.constant dense<0.000000e+00> : vector<1x128xf32>
    %206 = tpu.matmul %204, %205, %cst_70 {dimension_numbers = #tpu.dot_dimension_numbers<[1], [0], [0], [1], [0, 0, 1, 1], [], []>} : vector<1x32xbf16>, vector<32x128xbf16>, vector<1x128xf32> -> vector<1x128xf32>
    %207 = arith.addf %206, %26 : vector<1x128xf32>
    %c0_71 = arith.constant 0 : index
    %c0_72 = arith.constant 0 : index
    %c0_73 = arith.constant 0 : index
    %208 = vector.load %arg8[%c0_71, %c0_72, %c0_73] : memref<1x1x128xf32, #tpu.memory_space<vmem>>, vector<1x1x128xf32>
    %209 = vector.shape_cast %208 : vector<1x1x128xf32> to vector<1x128xf32>
    %210 = vector.shape_cast %196 : vector<1x128xf32> to vector<1x1x128xf32>
    tpu.vector_store %arg8[%c0_71, %c0_72, %c0_73], %210 {strides = array<i32>} : memref<1x1x128xf32, #tpu.memory_space<vmem>>, vector<1x1x128xf32>,
    %c0_74 = arith.constant 0 : index
    %c0_75 = arith.constant 0 : index
    %c0_76 = arith.constant 0 : index
    %211 = vector.load %arg9[%c0_74, %c0_75, %c0_76] : memref<1x1x128xf32, #tpu.memory_space<vmem>>, vector<1x1x128xf32>
    %212 = vector.shape_cast %211 : vector<1x1x128xf32> to vector<1x128xf32>
    %213 = vector.shape_cast %207 : vector<1x128xf32> to vector<1x1x128xf32>
    tpu.vector_store %arg9[%c0_74, %c0_75, %c0_76], %213 {strides = array<i32>} : memref<1x1x128xf32, #tpu.memory_space<vmem>>, vector<1x1x128xf32>,
    return
  }
  func.func @transform_0(%arg0: i32) -> (i32, i32, i32) {
    %c0_i32 = arith.constant 0 : i32
    %c0_i32_0 = arith.constant 0 : i32
    %c0_i32_1 = arith.constant 0 : i32
    return %arg0, %c0_i32, %c0_i32_0 : i32, i32, i32
  }
  func.func @transform_1(%arg0: i32) -> (i32, i32, i32) {
    %c0_i32 = arith.constant 0 : i32
    %c0_i32_0 = arith.constant 0 : i32
    %c0_i32_1 = arith.constant 0 : i32
    return %arg0, %c0_i32, %c0_i32_0 : i32, i32, i32
  }
  func.func @transform_2(%arg0: i32) -> (i32, i32) {
    %c0_i32 = arith.constant 0 : i32
    %c0_i32_0 = arith.constant 0 : i32
    %c0_i32_1 = arith.constant 0 : i32
    return %c0_i32, %c0_i32_0 : i32, i32
  }
  func.func @transform_3(%arg0: i32) -> (i32, i32) {
    %c0_i32 = arith.constant 0 : i32
    %c0_i32_0 = arith.constant 0 : i32
    %c0_i32_1 = arith.constant 0 : i32
    return %c0_i32, %c0_i32_0 : i32, i32
  }
  func.func @transform_4(%arg0: i32) -> (i32, i32) {
    %c0_i32 = arith.constant 0 : i32
    %c0_i32_0 = arith.constant 0 : i32
    %c0_i32_1 = arith.constant 0 : i32
    return %c0_i32, %c0_i32_0 : i32, i32
  }
  func.func @transform_5(%arg0: i32) -> (i32, i32) {
    %c0_i32 = arith.constant 0 : i32
    %c0_i32_0 = arith.constant 0 : i32
    %c0_i32_1 = arith.constant 0 : i32
    return %c0_i32, %c0_i32_0 : i32, i32
  }
  func.func @transform_6(%arg0: i32) -> (i32, i32) {
    %c0_i32 = arith.constant 0 : i32
    %c0_i32_0 = arith.constant 0 : i32
    %c0_i32_1 = arith.constant 0 : i32
    return %c0_i32, %c0_i32_0 : i32, i32
  }
  func.func @transform_7(%arg0: i32) -> (i32, i32, i32) {
    %c0_i32 = arith.constant 0 : i32
    %c0_i32_0 = arith.constant 0 : i32
    %c0_i32_1 = arith.constant 0 : i32
    return %arg0, %c0_i32, %c0_i32_0 : i32, i32, i32
  }
  func.func @transform_8(%arg0: i32) -> (i32, i32, i32) {
    %c0_i32 = arith.constant 0 : i32
    %c0_i32_0 = arith.constant 0 : i32
    %c0_i32_1 = arith.constant 0 : i32
    return %arg0, %c0_i32, %c0_i32_0 : i32, i32, i32
  }
}

</mosaic_0001>

<llo_original>
// kernel: tpu_custom_call.1
$region0: #{tpu_custom_call.1}
  #allocation0 [shape = 'u32[]', space=smem, size = 0x4, offset = 0x4, fixed_abs, tag = 'smem constant byte address 0x4 - core index']
  #allocation1 [shape = 'u32[72,128]{1,0:T(1,128)}', space=vmem, size = 0x9000, scoped, tag = 'internal scratch']
  %s0 = inlined_call_operand.vmem [shape: f32[2,3,128], index: 0, kind: input, shape index: {}]
  %s1 = inlined_call_operand.vmem [shape: f32[2,8,3], index: 1, kind: input, shape index: {}]
  %s2 = inlined_call_operand.vmem [shape: f32[96,3], index: 2, kind: input, shape index: {}]
  %s3 = inlined_call_operand.vmem [shape: f32[64,96], index: 3, kind: input, shape index: {}]
  %s4 = inlined_call_operand.vmem [shape: f32[32,384], index: 4, kind: input, shape index: {}]
  %s5 = inlined_call_operand.vmem [shape: f32[96,1], index: 5, kind: input, shape index: {}]
  %s6 = inlined_call_operand.vmem [shape: f32[21,128], index: 6, kind: input, shape index: {}]
  %s7 = inlined_call_operand.hbm [shape: f32[2,1,128], index: 7, kind: output, shape index: {0}]
  %s8 = inlined_call_operand.hbm [shape: f32[2,1,128], index: 8, kind: output, shape index: {1}]
  %9 = xla_tuple %s7, %s8
  %s10 = sld [smem:[#allocation0]]
  $region69: #{tpu_custom_call.1} parent=0
    _
  %s12 = ssub.s32 1, %s10
  %s13 = scalar_select 0, %s12, %s10
  $region1: #{tpu_custom_call.1} parent=0
    #allocation2 [shape = 'u8[1024]{0}', space=vmem, size = 0x400, scoped, tag = 'output window, operand 0']
    #allocation3 [shape = 's32[2]{0}', space=sflag, size = 0x8, scoped, tag = 'scoped memory for tpu_custom_call.1']
    #allocation4 [shape = 'u8[1024]{0}', space=vmem, size = 0x400, scoped, tag = 'output window, operand 1']
    #allocation5 [shape = 's32[2]{0}', space=sflag, size = 0x8, scoped, tag = 'scoped memory for tpu_custom_call.1']
    %14 = vsyncpa [#allocation3], 0
    %s15 = scalar_lea.sflag [#allocation3], 1
    %16 = vsyncpa %s15, 0
    %17 = vsyncpa [#allocation5], 0
    %s18 = scalar_lea.sflag [#allocation5], 1
    %19 = vsyncpa %s18, 0
    loop: start=0, step=1, limit=4
    $region2: #{tpu_custom_call.1} parent=1 // loop_pre_header
      _
    $region3: #{tpu_custom_call.1} parent=1 // loop_header
      %s21 = sphi 0, %s25
      %p22 = scmp.ge.s32.totalorder %s21, 4
      %s31 = sphi 0, %s33
      %s34 = sphi 0, %s31
      %s35 = sphi 0, %s34
      %s51 = sphi 0, %s35
      %s57 = sphi 0, %s59
      %s60 = sphi 0, %s57
      %s61 = sphi 0, %s60
      %s77 = sphi 0, %s61
      %s81 = sphi 0, %s81
      %s83 = sphi 0, %s81
      %s84 = sphi 0, %s83
      %s98 = sphi 0, %s84
      %s102 = sphi 0, %s102
      %s104 = sphi 0, %s102
      %s105 = sphi 0, %s104
      %s119 = sphi 0, %s105
      %s123 = sphi 0, %s123
      %s125 = sphi 0, %s123
      %s126 = sphi 0, %s125
      %s140 = sphi 0, %s126
      %s144 = sphi 0, %s144
      %s146 = sphi 0, %s144
      %s147 = sphi 0, %s146
      %s161 = sphi 0, %s147
      %s165 = sphi 0, %s165
      %s167 = sphi 0, %s165
      %s168 = sphi 0, %s167
      %s182 = sphi 0, %s168
      %s188 = sphi 0, %s190
      %s191 = sphi 0, %s188
      %s192 = sphi 0, %s191
      %s208 = sphi 0, %s192
      %s214 = sphi 0, %s216
      %s217 = sphi 0, %s214
      %s218 = sphi 0, %s217
      %s234 = sphi 0, %s218
    $region4: #{tpu_custom_call.1} parent=1 // loop_header_branch
      %24 = sbr.rel (%p22) target = $region8
    $region5: #{tpu_custom_call.1} parent=1 // loop_body
      %s26 = ssub.s32 %s21, 1
      %s27 = ssub.s32 %s21, 2
      %s28 = sadd.s32 %s21, 1
      %s29 = ssub.s32 %s21, %s28
      %p30 = scmp.eq.s32.totalorder %s29, 0
      %s32 = sadd.s32 %s31, 1
      %s33 = scalar_select %p30, %s31, %s32
      %p36 = pneg %p30
      %p37 = scmp.eq.s32.totalorder %s21, 1
      %p38 = por %p36, %p37
      %p39 = scmp.ne.s32.totalorder %s31, %s34
      %p40 = scmp.eq.s32.totalorder %s21, 0
      %p41 = por %p39, %p40
      %p42 = scmp.ne.s32.totalorder %s31, %s34
      %p43 = scmp.eq.s32.totalorder %s26, 1
      %p44 = por %p42, %p43
      %p45 = scmp.ne.s32.totalorder %s34, %s35
      %p46 = scmp.eq.s32.totalorder %s26, 0
      %p47 = por %p45, %p46
      %p48 = scmp.ne.s32.totalorder %s34, %s35
      %p49 = scmp.eq.s32.totalorder %s27, 1
      %p50 = por %p48, %p49
      %p52 = scmp.ne.s32.totalorder %s35, %s51
      %p53 = scmp.eq.s32.totalorder %s27, 0
      %p54 = por %p52, %p53
      %s55 = ssub.s32 %s21, %s28
      %p56 = scmp.eq.s32.totalorder %s55, 0
      %s58 = sadd.s32 %s57, 1
      %s59 = scalar_select %p56, %s57, %s58
      %p62 = pneg %p56
      %p63 = scmp.eq.s32.totalorder %s21, 1
      %p64 = por %p62, %p63
      %p65 = scmp.ne.s32.totalorder %s57, %s60
      %p66 = scmp.eq.s32.totalorder %s21, 0
      %p67 = por %p65, %p66
      %p68 = scmp.ne.s32.totalorder %s57, %s60
      %p69 = scmp.eq.s32.totalorder %s26, 1
      %p70 = por %p68, %p69
      %p71 = scmp.ne.s32.totalorder %s60, %s61
      %p72 = scmp.eq.s32.totalorder %s26, 0
      %p73 = por %p71, %p72
      %p74 = scmp.ne.s32.totalorder %s60, %s61
      %p75 = scmp.eq.s32.totalorder %s27, 1
      %p76 = por %p74, %p75
      %p78 = scmp.ne.s32.totalorder %s61, %s77
      %p79 = scmp.eq.s32.totalorder %s27, 0
      %p80 = por %p78, %p79
      %s82 = sadd.s32 %s81, 1
      %p85 = scmp.eq.s32.totalorder %s21, 1
      %p86 = scmp.ne.s32.totalorder %s81, %s83
      %p87 = scmp.eq.s32.totalorder %s21, 0
      %p88 = por %p86, %p87
      %p89 = scmp.ne.s32.totalorder %s81, %s83
      %p90 = scmp.eq.s32.totalorder %s26, 1
      %p91 = por %p89, %p90
      %p92 = scmp.ne.s32.totalorder %s83, %s84
      %p93 = scmp.eq.s32.totalorder %s26, 0
      %p94 = por %p92, %p93
      %p95 = scmp.ne.s32.totalorder %s83, %s84
      %p96 = scmp.eq.s32.totalorder %s27, 1
      %p97 = por %p95, %p96
      %p99 = scmp.ne.s32.totalorder %s84, %s98
      %p100 = scmp.eq.s32.totalorder %s27, 0
      %p101 = por %p99, %p100
      %s103 = sadd.s32 %s102, 1
      %p106 = scmp.eq.s32.totalorder %s21, 1
      %p107 = scmp.ne.s32.totalorder %s102, %s104
      %p108 = scmp.eq.s32.totalorder %s21, 0
      %p109 = por %p107, %p108
      %p110 = scmp.ne.s32.totalorder %s102, %s104
      %p111 = scmp.eq.s32.totalorder %s26, 1
      %p112 = por %p110, %p111
      %p113 = scmp.ne.s32.totalorder %s104, %s105
      %p114 = scmp.eq.s32.totalorder %s26, 0
      %p115 = por %p113, %p114
      %p116 = scmp.ne.s32.totalorder %s104, %s105
      %p117 = scmp.eq.s32.totalorder %s27, 1
      %p118 = por %p116, %p117
      %p120 = scmp.ne.s32.totalorder %s105, %s119
      %p121 = scmp.eq.s32.totalorder %s27, 0
      %p122 = por %p120, %p121
      %s124 = sadd.s32 %s123, 1
      %p127 = scmp.eq.s32.totalorder %s21, 1
      %p128 = scmp.ne.s32.totalorder %s123, %s125
      %p129 = scmp.eq.s32.totalorder %s21, 0
      %p130 = por %p128, %p129
      %p131 = scmp.ne.s32.totalorder %s123, %s125
      %p132 = scmp.eq.s32.totalorder %s26, 1
      %p133 = por %p131, %p132
      %p134 = scmp.ne.s32.totalorder %s125, %s126
      %p135 = scmp.eq.s32.totalorder %s26, 0
      %p136 = por %p134, %p135
      %p137 = scmp.ne.s32.totalorder %s125, %s126
      %p138 = scmp.eq.s32.totalorder %s27, 1
      %p139 = por %p137, %p138
      %p141 = scmp.ne.s32.totalorder %s126, %s140
      %p142 = scmp.eq.s32.totalorder %s27, 0
      %p143 = por %p141, %p142
      %s145 = sadd.s32 %s144, 1
      %p148 = scmp.eq.s32.totalorder %s21, 1
      %p149 = scmp.ne.s32.totalorder %s144, %s146
      %p150 = scmp.eq.s32.totalorder %s21, 0
      %p151 = por %p149, %p150
      %p152 = scmp.ne.s32.totalorder %s144, %s146
      %p153 = scmp.eq.s32.totalorder %s26, 1
      %p154 = por %p152, %p153
      %p155 = scmp.ne.s32.totalorder %s146, %s147
      %p156 = scmp.eq.s32.totalorder %s26, 0
      %p157 = por %p155, %p156
      %p158 = scmp.ne.s32.totalorder %s146, %s147
      %p159 = scmp.eq.s32.totalorder %s27, 1
      %p160 = por %p158, %p159
      %p162 = scmp.ne.s32.totalorder %s147, %s161
      %p163 = scmp.eq.s32.totalorder %s27, 0
      %p164 = por %p162, %p163
      %s166 = sadd.s32 %s165, 1
      %p169 = scmp.eq.s32.totalorder %s21, 1
      %p170 = scmp.ne.s32.totalorder %s165, %s167
      %p171 = scmp.eq.s32.totalorder %s21, 0
      %p172 = por %p170, %p171
      %p173 = scmp.ne.s32.totalorder %s165, %s167
      %p174 = scmp.eq.s32.totalorder %s26, 1
      %p175 = por %p173, %p174
      %p176 = scmp.ne.s32.totalorder %s167, %s168
      %p177 = scmp.eq.s32.totalorder %s26, 0
      %p178 = por %p176, %p177
      %p179 = scmp.ne.s32.totalorder %s167, %s168
      %p180 = scmp.eq.s32.totalorder %s27, 1
      %p181 = por %p179, %p180
      %p183 = scmp.ne.s32.totalorder %s168, %s182
      %p184 = scmp.eq.s32.totalorder %s27, 0
      %p185 = por %p183, %p184
      %s186 = ssub.s32 %s21, %s28
      %p187 = scmp.eq.s32.totalorder %s186, 0
      %s189 = sadd.s32 %s188, 1
      %s190 = scalar_select %p187, %s188, %s189
      %p193 = pneg %p187
      %p194 = scmp.eq.s32.totalorder %s21, 1
      %p195 = por %p193, %p194
      %p196 = scmp.ne.s32.totalorder %s188, %s191
      %p197 = scmp.eq.s32.totalorder %s21, 0
      %p198 = por %p196, %p197
      %p199 = scmp.ne.s32.totalorder %s188, %s191
      %p200 = scmp.eq.s32.totalorder %s26, 1
      %p201 = por %p199, %p200
      %p202 = scmp.ne.s32.totalorder %s191, %s192
      %p203 = scmp.eq.s32.totalorder %s26, 0
      %p204 = por %p202, %p203
      %p205 = scmp.ne.s32.totalorder %s191, %s192
      %p206 = scmp.eq.s32.totalorder %s27, 1
      %p207 = por %p205, %p206
      %p209 = scmp.ne.s32.totalorder %s192, %s208
      %p210 = scmp.eq.s32.totalorder %s27, 0
      %p211 = por %p209, %p210
      %s212 = ssub.s32 %s21, %s28
      %p213 = scmp.eq.s32.totalorder %s212, 0
      %s215 = sadd.s32 %s214, 1
      %s216 = scalar_select %p213, %s214, %s215
      %p219 = pneg %p213
      %p220 = scmp.eq.s32.totalorder %s21, 1
      %p221 = por %p219, %p220
      %p222 = scmp.ne.s32.totalorder %s214, %s217
      %p223 = scmp.eq.s32.totalorder %s21, 0
      %p224 = por %p222, %p223
      %p225 = scmp.ne.s32.totalorder %s214, %s217
      %p226 = scmp.eq.s32.totalorder %s26, 1
      %p227 = por %p225, %p226
      %p228 = scmp.ne.s32.totalorder %s217, %s218
      %p229 = scmp.eq.s32.totalorder %s26, 0
      %p230 = por %p228, %p229
      %p231 = scmp.ne.s32.totalorder %s217, %s218
      %p232 = scmp.eq.s32.totalorder %s27, 1
      %p233 = por %p231, %p232
      %p235 = scmp.ne.s32.totalorder %s218, %s234
      %p236 = scmp.eq.s32.totalorder %s27, 0
      %p237 = por %p235, %p236
      %p238 = scmp.le.s32.totalorder 1, %s21
      %p239 = scmp.lt.s32.totalorder %s21, 3
      %p240 = pnand %p238, %p239
      %p241 = pneg %p240
      // Predicated region
      $region9: #{tpu_custom_call.1} parent=5 // pred_check
        _
      $region10: #{tpu_custom_call.1} parent=5 // pred_check_branch
        %243 = sbr.rel (%p240) target = $region12
      $region11: #{tpu_custom_call.1} parent=5 // pred_region
        %s244 = ssub.s32 %s21, 1
        // Predicated region
        $region13: #{tpu_custom_call.1} parent=11 // pred_check
          %p245 = pneg %p94
        $region14: #{tpu_custom_call.1} parent=11 // pred_check_branch
          %247 = sbr.rel (%p245) target = $region16
        $region15: #{tpu_custom_call.1} parent=11 // pred_region
          _
        $region16: #{tpu_custom_call.1} parent=11 // pred_fallthru
          _
        // Predicated region
        $region17: #{tpu_custom_call.1} parent=11 // pred_check
          %p248 = pneg %p115
        $region18: #{tpu_custom_call.1} parent=11 // pred_check_branch
          %250 = sbr.rel (%p248) target = $region20
        $region19: #{tpu_custom_call.1} parent=11 // pred_region
          _
        $region20: #{tpu_custom_call.1} parent=11 // pred_fallthru
          _
        // Predicated region
        $region21: #{tpu_custom_call.1} parent=11 // pred_check
          %p251 = pneg %p136
        $region22: #{tpu_custom_call.1} parent=11 // pred_check_branch
          %253 = sbr.rel (%p251) target = $region24
        $region23: #{tpu_custom_call.1} parent=11 // pred_region
          _
        $region24: #{tpu_custom_call.1} parent=11 // pred_fallthru
          _
        // Predicated region
        $region25: #{tpu_custom_call.1} parent=11 // pred_check
          %p254 = pneg %p157
        $region26: #{tpu_custom_call.1} parent=11 // pred_check_branch
          %256 = sbr.rel (%p254) target = $region28
        $region27: #{tpu_custom_call.1} parent=11 // pred_region
          _
        $region28: #{tpu_custom_call.1} parent=11 // pred_fallthru
          _
        // Predicated region
        $region29: #{tpu_custom_call.1} parent=11 // pred_check
          %p257 = pneg %p178
        $region30: #{tpu_custom_call.1} parent=11 // pred_check_branch
          %259 = sbr.rel (%p257) target = $region32
        $region31: #{tpu_custom_call.1} parent=11 // pred_region
          _
        $region32: #{tpu_custom_call.1} parent=11 // pred_fallthru
          _
      $region12: #{tpu_custom_call.1} parent=5 // pred_fallthru
        _
      %p260 = scmp.lt.s32.totalorder %s21, 2
      // Predicated region
      $region33: #{tpu_custom_call.1} parent=5 // pred_check
        %p261 = pneg %p260
      $region34: #{tpu_custom_call.1} parent=5 // pred_check_branch
        %263 = sbr.rel (%p261) target = $region36
      $region35: #{tpu_custom_call.1} parent=5 // pred_region
        // Predicated region
        $region37: #{tpu_custom_call.1} parent=35 // pred_check
          %p264 = pneg %p41
        $region38: #{tpu_custom_call.1} parent=35 // pred_check_branch
          %266 = sbr.rel (%p264) target = $region40
        $region39: #{tpu_custom_call.1} parent=35 // pred_region
          %p267 = scmp.lt.s32.totalorder %s21, 1
          %s268 = scalar_select %p267, %s21, 1
          %s269 = smul.addr %s268, 4
          %s270 = scalar_lea.vmem %s0, %s269
        $region40: #{tpu_custom_call.1} parent=35 // pred_fallthru
          _
        // Predicated region
        $region41: #{tpu_custom_call.1} parent=35 // pred_check
          %p271 = pneg %p67
        $region42: #{tpu_custom_call.1} parent=35 // pred_check_branch
          %273 = sbr.rel (%p271) target = $region44
        $region43: #{tpu_custom_call.1} parent=35 // pred_region
          %p274 = scmp.lt.s32.totalorder %s21, 1
          %s275 = scalar_select %p274, %s21, 1
          %s276 = smul.addr %s275, 8
          %s277 = scalar_lea.vmem %s1, %s276
        $region44: #{tpu_custom_call.1} parent=35 // pred_fallthru
          _
      $region36: #{tpu_custom_call.1} parent=5 // pred_fallthru
        _
      %p278 = scmp.le.s32.totalorder 1, %s21
      %p279 = scmp.lt.s32.totalorder %s21, 3
      %p280 = pnand %p278, %p279
      %p281 = pneg %p280
      // Predicated region
      $region45: #{tpu_custom_call.1} parent=5 // pred_check
        _
      $region46: #{tpu_custom_call.1} parent=5 // pred_check_branch
        %283 = sbr.rel (%p280) target = $region48
      $region47: #{tpu_custom_call.1} parent=5 // pred_region
        %s284 = ssub.s32 %s21, 1
        %p285 = scmp.lt.s32.totalorder %s26, 1
        %s286 = scalar_select %p285, %s26, 1
        %s287 = smul.addr %s286, 4
        %s288 = scalar_lea.vmem %s0, %s287
        %p289 = pneg %p47
        %p290 = pneg %p44
        %p291 = scmp.lt.s32.totalorder %s26, 1
        %s292 = scalar_select %p291, %s26, 1
        %s293 = smul.addr %s292, 8
        %s294 = scalar_lea.vmem %s1, %s293
        %p295 = pneg %p73
        %p296 = pneg %p70
        %p297 = pneg %p94
        %p298 = pneg %p91
        %p299 = pneg %p115
        %p300 = pneg %p112
        %p301 = pneg %p136
        %p302 = pneg %p133
        %p303 = pneg %p157
        %p304 = pneg %p154
        %p305 = pneg %p178
        %p306 = pneg %p175
        %p307 = pneg %p204
        %p308 = pneg %p201
        %s309 = sand.u32 %s191, 1
        %s310 = scalar_lea.sflag [#allocation3], %s309
        %s311 = sand.u32 %s191, 1
        %s312 = scalar_lea.vmem [#allocation2], %s311
        %p313 = pneg %p230
        %p314 = pneg %p227
        %s315 = sand.u32 %s217, 1
        %s316 = scalar_lea.sflag [#allocation5], %s315
        %s317 = sand.u32 %s217, 1
        %s318 = scalar_lea.vmem [#allocation4], %s317
        %p319 = scmp.lt.s32.totalorder %s26, 1
        %s320 = scalar_select %p319, %s26, 1
        %s321 = smul.addr %s320, 4
        %s322 = scalar_lea.vmem %s0, %s321
        %p323 = scmp.lt.s32.totalorder %s26, 1
        %s324 = scalar_select %p323, %s26, 1
        %s325 = smul.addr %s324, 8
        %s326 = scalar_lea.vmem %s1, %s325
        %v328 = vld [vmem:[%s322] sm:$0x7]
        %v329 = vld [vmem:[%s326] sm:$0xff]
        %v330 = vld [vmem:[%s2] sm:$0xff]
        %v331 = vld [vmem:[%s2 + $0x8] sm:$0xff]
        %v332 = vld [vmem:[%s2 + $0x10] sm:$0xff]
        %v333 = vld [vmem:[%s2 + $0x18] sm:$0xff]
        %v334 = vld [vmem:[%s2 + $0x20] sm:$0xff]
        %v335 = vld [vmem:[%s2 + $0x28] sm:$0xff]
        %v336 = vld [vmem:[%s2 + $0x30] sm:$0xff]
        %v337 = vld [vmem:[%s2 + $0x38] sm:$0xff]
        %v338 = vld [vmem:[%s2 + $0x40] sm:$0xff]
        %v339 = vld [vmem:[%s2 + $0x48] sm:$0xff]
        %v340 = vld [vmem:[%s2 + $0x50] sm:$0xff]
        %v341 = vld [vmem:[%s2 + $0x58] sm:$0xff]
        %v342 = vld [vmem:[%s3] sm:$0xff]
        %v343 = vld [vmem:[%s3 + $0x8] sm:$0xff]
        %v344 = vld [vmem:[%s3 + $0x10] sm:$0xff]
        %v345 = vld [vmem:[%s3 + $0x18] sm:$0xff]
        %v346 = vld [vmem:[%s3 + $0x20] sm:$0xff]
        %v347 = vld [vmem:[%s3 + $0x28] sm:$0xff]
        %v348 = vld [vmem:[%s3 + $0x30] sm:$0xff]
        %v349 = vld [vmem:[%s3 + $0x38] sm:$0xff]
        %v350 = vld [vmem:[%s4] sm:$0xff]
        %v351 = vld [vmem:[%s4 + $0x18] sm:$0xff]
        %v352 = vld [vmem:[%s4 + $0x30] sm:$0xff]
        %v353 = vld [vmem:[%s4 + $0x48] sm:$0xff]
        %v354 = vld [vmem:[%s4 + $0x8] sm:$0xff]
        %v355 = vld [vmem:[%s4 + $0x20] sm:$0xff]
        %v356 = vld [vmem:[%s4 + $0x38] sm:$0xff]
        %v357 = vld [vmem:[%s4 + $0x50] sm:$0xff]
        %v358 = vld [vmem:[%s4 + $0x10] sm:$0xff]
        %v359 = vld [vmem:[%s4 + $0x28] sm:$0xff]
        %v360 = vld [vmem:[%s4 + $0x40] sm:$0xff]
        %v361 = vld [vmem:[%s4 + $0x58] sm:$0xff]
        %v362 = vld [vmem:[%s5] sm:$0xff]
        %v363 = vld [vmem:[%s5 + $0x8] sm:$0xff]
        %v364 = vld [vmem:[%s5 + $0x10] sm:$0xff]
        %v365 = vld [vmem:[%s5 + $0x18] sm:$0xff]
        %v366 = vld [vmem:[%s5 + $0x20] sm:$0xff]
        %v367 = vld [vmem:[%s5 + $0x28] sm:$0xff]
        %v368 = vld [vmem:[%s5 + $0x30] sm:$0xff]
        %v369 = vld [vmem:[%s5 + $0x38] sm:$0xff]
        %v370 = vld [vmem:[%s5 + $0x40] sm:$0xff]
        %v371 = vld [vmem:[%s5 + $0x48] sm:$0xff]
        %v372 = vld [vmem:[%s5 + $0x50] sm:$0xff]
        %v373 = vld [vmem:[%s5 + $0x58] sm:$0xff]
        %v374 = vld [vmem:[%s6] sm:$0xff]
        %v375 = vld [vmem:[%s6 + $0x8] sm:$0x7]
        %v376 = vld [vmem:[%s6 + $0xb] sm:$0x1]
        %v377 = vld [vmem:[%s6 + $0xc] sm:$0x1]
        %v378 = vld [vmem:[%s6 + $0xd] sm:$0x1]
        %v379 = vld [vmem:[%s6 + $0xe] sm:$0x1]
        %v380 = vld [vmem:[%s6 + $0xf] sm:$0x1]
        %v381 = vld [vmem:[%s6 + $0x10] sm:$0x1]
        %v382 = vld [vmem:[%s6 + $0x11] sm:$0x1]
        %v383 = vld [vmem:[%s6 + $0x12] sm:$0x1]
        %v384 = vld [vmem:[%s6 + $0x13] sm:$0x1]
        %v385 = vld [vmem:[%s6 + $0x14] sm:$0x1]
        %387 = vset.pattern.permute.xlu0 0
        %388 = vperm.xlu0 %387, %v330
        %v389 = vpop.permute.xlu0 %388
        %392 = vset.pattern.permute.xlu0 0
        %393 = vperm.xlu0 %392, %v331
        %v394 = vpop.permute.xlu0 %393
        %397 = vset.pattern.permute.xlu0 0
        %398 = vperm.xlu0 %397, %v332
        %v399 = vpop.permute.xlu0 %398
        %402 = vset.pattern.permute.xlu0 0
        %403 = vperm.xlu0 %402, %v333
        %v404 = vpop.permute.xlu0 %403
        %407 = vset.pattern.permute.xlu0 0
        %408 = vperm.xlu0 %407, %v334
        %v409 = vpop.permute.xlu0 %408
        %412 = vset.pattern.permute.xlu0 0
        %413 = vperm.xlu0 %412, %v335
        %v414 = vpop.permute.xlu0 %413
        %417 = vset.pattern.permute.xlu0 0
        %418 = vperm.xlu0 %417, %v336
        %v419 = vpop.permute.xlu0 %418
        %422 = vset.pattern.permute.xlu0 0
        %423 = vperm.xlu0 %422, %v337
        %v424 = vpop.permute.xlu0 %423
        %v426 = vperm.slane %v328, 0
        %v427 = vmul.f32 %v389, %v426
        %v428 = vmul.f32 %v394, %v426
        %v429 = vmul.f32 %v399, %v426
        %v430 = vmul.f32 %v404, %v426
        %v431 = vmul.f32 %v409, %v426
        %v432 = vmul.f32 %v414, %v426
        %v433 = vmul.f32 %v419, %v426
        %v434 = vmul.f32 %v424, %v426
        %435 = vset.pattern.permute.xlu0 1
        %436 = vperm.xlu0 %435, %v330
        %v437 = vpop.permute.xlu0 %436
        %439 = vset.pattern.permute.xlu0 1
        %440 = vperm.xlu0 %439, %v331
        %v441 = vpop.permute.xlu0 %440
        %443 = vset.pattern.permute.xlu0 1
        %444 = vperm.xlu0 %443, %v332
        %v445 = vpop.permute.xlu0 %444
        %447 = vset.pattern.permute.xlu0 1
        %448 = vperm.xlu0 %447, %v333
        %v449 = vpop.permute.xlu0 %448
        %451 = vset.pattern.permute.xlu0 1
        %452 = vperm.xlu0 %451, %v334
        %v453 = vpop.permute.xlu0 %452
        %455 = vset.pattern.permute.xlu0 1
        %456 = vperm.xlu0 %455, %v335
        %v457 = vpop.permute.xlu0 %456
        %459 = vset.pattern.permute.xlu0 1
        %460 = vperm.xlu0 %459, %v336
        %v461 = vpop.permute.xlu0 %460
        %463 = vset.pattern.permute.xlu0 1
        %464 = vperm.xlu0 %463, %v337
        %v465 = vpop.permute.xlu0 %464
        %v467 = vperm.slane %v328, 1
        %v468 = vmul.f32 %v437, %v467
        %v469 = vmul.f32 %v441, %v467
        %v470 = vmul.f32 %v445, %v467
        %v471 = vmul.f32 %v449, %v467
        %v472 = vmul.f32 %v453, %v467
        %v473 = vmul.f32 %v457, %v467
        %v474 = vmul.f32 %v461, %v467
        %v475 = vmul.f32 %v465, %v467
        %v476 = vadd.f32 %v427, %v468
        %v477 = vadd.f32 %v428, %v469
        %v478 = vadd.f32 %v429, %v470
        %v479 = vadd.f32 %v430, %v471
        %v480 = vadd.f32 %v431, %v472
        %v481 = vadd.f32 %v432, %v473
        %v482 = vadd.f32 %v433, %v474
        %v483 = vadd.f32 %v434, %v475
        %484 = vset.pattern.permute.xlu0 2
        %485 = vperm.xlu0 %484, %v330
        %v486 = vpop.permute.xlu0 %485
        %488 = vset.pattern.permute.xlu0 2
        %489 = vperm.xlu0 %488, %v331
        %v490 = vpop.permute.xlu0 %489
        %492 = vset.pattern.permute.xlu0 2
        %493 = vperm.xlu0 %492, %v332
        %v494 = vpop.permute.xlu0 %493
        %496 = vset.pattern.permute.xlu0 2
        %497 = vperm.xlu0 %496, %v333
        %v498 = vpop.permute.xlu0 %497
        %500 = vset.pattern.permute.xlu0 2
        %501 = vperm.xlu0 %500, %v334
        %v502 = vpop.permute.xlu0 %501
        %504 = vset.pattern.permute.xlu0 2
        %505 = vperm.xlu0 %504, %v335
        %v506 = vpop.permute.xlu0 %505
        %508 = vset.pattern.permute.xlu0 2
        %509 = vperm.xlu0 %508, %v336
        %v510 = vpop.permute.xlu0 %509
        %512 = vset.pattern.permute.xlu0 2
        %513 = vperm.xlu0 %512, %v337
        %v514 = vpop.permute.xlu0 %513
        %v516 = vperm.slane %v328, 2
        %v517 = vmul.f32 %v486, %v516
        %v518 = vmul.f32 %v490, %v516
        %v519 = vmul.f32 %v494, %v516
        %v520 = vmul.f32 %v498, %v516
        %v521 = vmul.f32 %v502, %v516
        %v522 = vmul.f32 %v506, %v516
        %v523 = vmul.f32 %v510, %v516
        %v524 = vmul.f32 %v514, %v516
        %v525 = vadd.f32 %v476, %v517
        %v526 = vadd.f32 %v477, %v518
        %v527 = vadd.f32 %v478, %v519
        %v528 = vadd.f32 %v479, %v520
        %v529 = vadd.f32 %v480, %v521
        %v530 = vadd.f32 %v481, %v522
        %v531 = vadd.f32 %v482, %v523
        %v532 = vadd.f32 %v483, %v524
        %534 = vset.pattern.permute.xlu0 0
        %535 = vperm.xlu0 %534, %v362
        %v536 = vpop.permute.xlu0 %535
        %539 = vset.pattern.permute.xlu0 0
        %540 = vperm.xlu0 %539, %v363
        %v541 = vpop.permute.xlu0 %540
        %544 = vset.pattern.permute.xlu0 0
        %545 = vperm.xlu0 %544, %v364
        %v546 = vpop.permute.xlu0 %545
        %549 = vset.pattern.permute.xlu0 0
        %550 = vperm.xlu0 %549, %v365
        %v551 = vpop.permute.xlu0 %550
        %554 = vset.pattern.permute.xlu0 0
        %555 = vperm.xlu0 %554, %v366
        %v556 = vpop.permute.xlu0 %555
        %559 = vset.pattern.permute.xlu0 0
        %560 = vperm.xlu0 %559, %v367
        %v561 = vpop.permute.xlu0 %560
        %564 = vset.pattern.permute.xlu0 0
        %565 = vperm.xlu0 %564, %v368
        %v566 = vpop.permute.xlu0 %565
        %569 = vset.pattern.permute.xlu0 0
        %570 = vperm.xlu0 %569, %v369
        %v571 = vpop.permute.xlu0 %570
        %v573 = vadd.f32 %v525, %v536
        %v574 = vadd.f32 %v526, %v541
        %v575 = vadd.f32 %v527, %v546
        %v576 = vadd.f32 %v528, %v551
        %v577 = vadd.f32 %v529, %v556
        %v578 = vadd.f32 %v530, %v561
        %v579 = vadd.f32 %v531, %v566
        %v580 = vadd.f32 %v532, %v571
        %v581 = vmax.f32 %v573, 0.0
        %v582 = vmax.f32 %v574, 0.0
        %v583 = vmax.f32 %v575, 0.0
        %v584 = vmax.f32 %v576, 0.0
        %v585 = vmax.f32 %v577, 0.0
        %v586 = vmax.f32 %v578, 0.0
        %v587 = vmax.f32 %v579, 0.0
        %v588 = vmax.f32 %v580, 0.0
        %v589 = vpack.c.bf16 %v343, %v342
        %v590 = vpack.c.bf16 %v345, %v344
        %v591 = vpack.c.bf16 %v347, %v346
        %v592 = vpack.c.bf16 %v349, %v348
        %v593 = vpack.c.bf16 %v582, %v581
        %v594 = vpack.c.bf16 %v584, %v583
        %v595 = vpack.c.bf16 %v586, %v585
        %v596 = vpack.c.bf16 %v588, %v587
        %598 = vset.pattern.permute.xlu0 0
        %599 = vperm.xlu0 %598, %v370
        %v600 = vpop.permute.xlu0 %599
        %603 = vset.pattern.permute.xlu0 0
        %604 = vperm.xlu0 %603, %v371
        %v605 = vpop.permute.xlu0 %604
        %608 = vset.pattern.permute.xlu0 0
        %609 = vperm.xlu0 %608, %v372
        %v610 = vpop.permute.xlu0 %609
        %613 = vset.pattern.permute.xlu0 0
        %614 = vperm.xlu0 %613, %v373
        %v615 = vpop.permute.xlu0 %614
        %617 = vxpose.xlu0.c.b16.start [1/8] %v589, 128
        %618 = vxpose.xlu0.c.b16.cont [2/8] %v590, 128
        %619 = vxpose.xlu0.c.b16.cont [3/8] %v591, 128
        %620 = vxpose.xlu0.c.b16.cont [4/8] %v592, 128
        %621 = vxpose.xlu0.c.b16.cont [5/8] 0, 128
        %622 = vxpose.xlu0.c.b16.cont [6/8] 0, 128
        %623 = vxpose.xlu0.c.b16.cont [7/8] 0, 128
        %624 = vxpose.xlu0.c.b16.end [8/8] 0, 128
        %v625 = vpop.trf.xlu0
        %v626 = vpop.trf.xlu0
        %v627 = vpop.trf.xlu0
        %v628 = vpop.trf.xlu0
        %v629 = vpop.trf.xlu0
        %v630 = vpop.trf.xlu0
        %v631 = vpop.trf.xlu0
        %v632 = vpop.trf.xlu0
        %vm633 = vcmask 523264
        %v635 = vsel %vm633, %v625, 0
        %v638 = vsel %vm633, %v626, 0
        %640 = vmatpush.bf16.msra.mxu0 0
        %641 = vmatpush.bf16.msra.mxu0 0
        %642 = vmatpush.bf16.msra.mxu0 0
        %643 = vmatpush.bf16.msra.mxu0 0
        %644 = vmatpush.bf16.msra.mxu0 %v596
        %645 = vmatpush.bf16.msra.mxu0 %v595
        %646 = vmatpush.bf16.msra.mxu0 %v594
        %647 = vmatpush.bf16.msra.mxu0 %v593
        %648 = vmatmul.bf16.gmra.mxu0 %v635
        %v649 = vpop.f32.mrf.mxu0
        %v650 = vadd.f32 %v600, %v649
        %v651 = vpop.f32.mrf.mxu0
        %v652 = vadd.f32 %v605, %v651
        %653 = vmatmul.bf16.gmra.mxu0 %v638
        %v654 = vpop.f32.mrf.mxu0
        %v655 = vadd.f32 %v610, %v654
        %v656 = vpop.f32.mrf.mxu0
        %v657 = vadd.f32 %v615, %v656
        %658 = vdwg.mxu0
        %660 = vset.pattern.permute.xlu0 0
        %661 = vperm.xlu0 %660, %v329
        %v662 = vpop.permute.xlu0 %661
        %v664 = vperm.slane %v375, 0
        %v665 = vmul.f32 %v662, %v664
        %666 = vset.pattern.permute.xlu0 1
        %667 = vperm.xlu0 %666, %v329
        %v668 = vpop.permute.xlu0 %667
        %v670 = vperm.slane %v375, 1
        %v671 = vmul.f32 %v668, %v670
        %v672 = vadd.f32 %v665, %v671
        %673 = vset.pattern.permute.xlu0 2
        %674 = vperm.xlu0 %673, %v329
        %v675 = vpop.permute.xlu0 %674
        %v677 = vperm.slane %v375, 2
        %v678 = vmul.f32 %v675, %v677
        %v679 = vadd.f32 %v672, %v678
        %v680 = vperm.slane %v376, 0
        %v681 = vadd.f32 %v679, %v680
        %v682 = vmax.f32 %v681, 0.0
        %v683 = vpack.c.bf16 %v682, %v682
        %v684 = vperm.slane %v377, 0
        %689 = vrot.lane.b32.xlu0 %v589, 96
        %v690 = vpop.permute.xlu0 %689
        %691 = vrot.lane.b32.xlu0 %v590, 96
        %v692 = vpop.permute.xlu0 %691
        %693 = vrot.lane.b32.xlu0 %v591, 96
        %v694 = vpop.permute.xlu0 %693
        %695 = vrot.lane.b32.xlu0 %v592, 96
        %v696 = vpop.permute.xlu0 %695
        %v702 = vsel %vm633, %v683, 0
        %704 = vmatpush.bf16.msra.mxu0 0
        %705 = vmatpush.bf16.msra.mxu0 0
        %706 = vmatpush.bf16.msra.mxu0 0
        %707 = vmatpush.bf16.msra.mxu0 0
        %708 = vmatpush.bf16.msra.mxu0 %v696
        %709 = vmatpush.bf16.msra.mxu0 %v694
        %710 = vmatpush.bf16.msra.mxu0 %v692
        %711 = vmatpush.bf16.msra.mxu0 %v690
        %712 = vmatmul.bf16.gmra.mxu0 %v702
        %v713 = vpop.f32.mrf.mxu0
        %v714 = vadd.f32 %v684, %v713
        %v715 = vpop.f32.mrf.mxu0
        %716 = vdwg.mxu0
        %718 = vset.pattern.permute.xlu0 0
        %719 = vperm.xlu0 %718, %v338
        %v720 = vpop.permute.xlu0 %719
        %723 = vset.pattern.permute.xlu0 0
        %724 = vperm.xlu0 %723, %v339
        %v725 = vpop.permute.xlu0 %724
        %728 = vset.pattern.permute.xlu0 0
        %729 = vperm.xlu0 %728, %v340
        %v730 = vpop.permute.xlu0 %729
        %733 = vset.pattern.permute.xlu0 0
        %734 = vperm.xlu0 %733, %v341
        %v735 = vpop.permute.xlu0 %734
        %v737 = vmul.f32 %v720, %v426
        %v738 = vmul.f32 %v725, %v426
        %v739 = vmul.f32 %v730, %v426
        %v740 = vmul.f32 %v735, %v426
        %741 = vset.pattern.permute.xlu0 1
        %742 = vperm.xlu0 %741, %v338
        %v743 = vpop.permute.xlu0 %742
        %745 = vset.pattern.permute.xlu0 1
        %746 = vperm.xlu0 %745, %v339
        %v747 = vpop.permute.xlu0 %746
        %749 = vset.pattern.permute.xlu0 1
        %750 = vperm.xlu0 %749, %v340
        %v751 = vpop.permute.xlu0 %750
        %753 = vset.pattern.permute.xlu0 1
        %754 = vperm.xlu0 %753, %v341
        %v755 = vpop.permute.xlu0 %754
        %v757 = vmul.f32 %v743, %v467
        %v758 = vmul.f32 %v747, %v467
        %v759 = vmul.f32 %v751, %v467
        %v760 = vmul.f32 %v755, %v467
        %v761 = vadd.f32 %v737, %v757
        %v762 = vadd.f32 %v738, %v758
        %v763 = vadd.f32 %v739, %v759
        %v764 = vadd.f32 %v740, %v760
        %765 = vset.pattern.permute.xlu0 2
        %766 = vperm.xlu0 %765, %v338
        %v767 = vpop.permute.xlu0 %766
        %769 = vset.pattern.permute.xlu0 2
        %770 = vperm.xlu0 %769, %v339
        %v771 = vpop.permute.xlu0 %770
        %773 = vset.pattern.permute.xlu0 2
        %774 = vperm.xlu0 %773, %v340
        %v775 = vpop.permute.xlu0 %774
        %777 = vset.pattern.permute.xlu0 2
        %778 = vperm.xlu0 %777, %v341
        %v779 = vpop.permute.xlu0 %778
        %v781 = vmul.f32 %v767, %v516
        %v782 = vmul.f32 %v771, %v516
        %v783 = vmul.f32 %v775, %v516
        %v784 = vmul.f32 %v779, %v516
        %v785 = vadd.f32 %v761, %v781
        %v786 = vadd.f32 %v762, %v782
        %v787 = vadd.f32 %v763, %v783
        %v788 = vadd.f32 %v764, %v784
        %v789 = vpack.c.bf16 %v351, %v350
        %v790 = vpack.c.bf16 %v353, %v352
        %v791 = vpack.c.bf16 %v652, %v650
        %v792 = vpack.c.bf16 %v657, %v655
        %795 = vrot.lane.b32.xlu0 %v789, 96
        %v796 = vpop.permute.xlu0 %795
        %797 = vrot.lane.b32.xlu0 %v790, 96
        %v798 = vpop.permute.xlu0 %797
        %801 = vxpose.xlu0.c.b16.start [1/8] %v796, 128
        %802 = vxpose.xlu0.c.b16.cont [2/8] %v798, 128
        %803 = vxpose.xlu0.c.b16.cont [3/8] 0, 128
        %804 = vxpose.xlu0.c.b16.cont [4/8] 0, 128
        %805 = vxpose.xlu0.c.b16.cont [5/8] 0, 128
        %806 = vxpose.xlu0.c.b16.cont [6/8] 0, 128
        %807 = vxpose.xlu0.c.b16.cont [7/8] 0, 128
        %808 = vxpose.xlu0.c.b16.end [8/8] 0, 128
        %v809 = vpop.trf.xlu0
        %v810 = vpop.trf.xlu0
        %v811 = vpop.trf.xlu0
        %v812 = vpop.trf.xlu0
        %v813 = vpop.trf.xlu0
        %v814 = vpop.trf.xlu0
        %v815 = vpop.trf.xlu0
        %v816 = vpop.trf.xlu0
        %vm817 = vcmask 261120
        %v819 = vsel %vm817, %v809, 0
        %v822 = vsel %vm817, %v810, 0
        %824 = vmatpush.bf16.msra.mxu0 0
        %825 = vmatpush.bf16.msra.mxu0 0
        %826 = vmatpush.bf16.msra.mxu0 0
        %827 = vmatpush.bf16.msra.mxu0 0
        %828 = vmatpush.bf16.msra.mxu0 0
        %829 = vmatpush.bf16.msra.mxu0 0
        %830 = vmatpush.bf16.msra.mxu0 %v792
        %831 = vmatpush.bf16.msra.mxu0 %v791
        %832 = vmatmul.bf16.gmra.mxu0 %v819
        %v833 = vpop.f32.mrf.mxu0
        %v834 = vadd.f32 %v785, %v833
        %v835 = vpop.f32.mrf.mxu0
        %v836 = vadd.f32 %v786, %v835
        %837 = vmatmul.bf16.gmra.mxu0 %v822
        %v838 = vpop.f32.mrf.mxu0
        %v839 = vadd.f32 %v787, %v838
        %v840 = vpop.f32.mrf.mxu0
        %v841 = vadd.f32 %v788, %v840
        %842 = vdwg.mxu0
        %843 = vrot.lane.b32.xlu0 %v789, 64
        %v844 = vpop.permute.xlu0 %843
        %845 = vrot.lane.b32.xlu0 %v790, 64
        %v846 = vpop.permute.xlu0 %845
        %849 = vxpose.xlu0.c.b16.start [1/8] %v844, 128
        %850 = vxpose.xlu0.c.b16.cont [2/8] %v846, 128
        %851 = vxpose.xlu0.c.b16.cont [3/8] 0, 128
        %852 = vxpose.xlu0.c.b16.cont [4/8] 0, 128
        %853 = vxpose.xlu0.c.b16.cont [5/8] 0, 128
        %854 = vxpose.xlu0.c.b16.cont [6/8] 0, 128
        %855 = vxpose.xlu0.c.b16.cont [7/8] 0, 128
        %856 = vxpose.xlu0.c.b16.end [8/8] 0, 128
        %v857 = vpop.trf.xlu0
        %v858 = vpop.trf.xlu0
        %v859 = vpop.trf.xlu0
        %v860 = vpop.trf.xlu0
        %v861 = vpop.trf.xlu0
        %v862 = vpop.trf.xlu0
        %v863 = vpop.trf.xlu0
        %v864 = vpop.trf.xlu0
        %v866 = vsel %vm817, %v857, 0
        %v869 = vsel %vm817, %v858, 0
        %871 = vmatpush.bf16.msra.mxu0 0
        %872 = vmatpush.bf16.msra.mxu0 0
        %873 = vmatpush.bf16.msra.mxu0 0
        %874 = vmatpush.bf16.msra.mxu0 0
        %875 = vmatpush.bf16.msra.mxu0 0
        %876 = vmatpush.bf16.msra.mxu0 0
        %877 = vmatpush.bf16.msra.mxu0 %v792
        %878 = vmatpush.bf16.msra.mxu0 %v791
        %879 = vmatmul.bf16.gmra.mxu0 %v866
        %v880 = vpop.f32.mrf.mxu0
        %v881 = vadd.f32 0.0, %v880
        %v882 = vpop.f32.mrf.mxu0
        %v883 = vadd.f32 0.0, %v882
        %884 = vmatmul.bf16.gmra.mxu0 %v869
        %v885 = vpop.f32.mrf.mxu0
        %v886 = vadd.f32 0.0, %v885
        %v887 = vpop.f32.mrf.mxu0
        %v888 = vadd.f32 0.0, %v887
        %889 = vdwg.mxu0
        %v890 = vpack.c.bf16 %v374, %v714
        %v892 = vsel %vm817, %v890, 0
        %894 = vmatpush.bf16.msra.mxu0 0
        %895 = vmatpush.bf16.msra.mxu0 0
        %896 = vmatpush.bf16.msra.mxu0 0
        %897 = vmatpush.bf16.msra.mxu0 0
        %898 = vmatpush.bf16.msra.mxu0 0
        %899 = vmatpush.bf16.msra.mxu0 0
        %900 = vmatpush.bf16.msra.mxu0 %v790
        %901 = vmatpush.bf16.msra.mxu0 %v789
        %902 = vmatmul.bf16.gmra.mxu0 %v892
        %v903 = vpop.f32.mrf.mxu0
        %v904 = vadd.f32 0.0, %v903
        %v905 = vpop.f32.mrf.mxu0
        %v906 = vadd.f32 0.0, %v905
        %907 = vdwg.mxu0
        %v908 = vpack.c.bf16 %v906, %v904
        %v909 = vpack.c.bf16 %v836, %v834
        %v910 = vpack.c.bf16 %v841, %v839
        %v912 = vsel %vm817, %v908, 0
        %914 = vmatpush.bf16.msra.mxu0 0
        %915 = vmatpush.bf16.msra.mxu0 0
        %916 = vmatpush.bf16.msra.mxu0 0
        %917 = vmatpush.bf16.msra.mxu0 0
        %918 = vmatpush.bf16.msra.mxu0 0
        %919 = vmatpush.bf16.msra.mxu0 0
        %920 = vmatpush.bf16.msra.mxu0 %v910
        %921 = vmatpush.bf16.msra.mxu0 %v909
        %922 = vmatmul.bf16.gmra.mxu0 %v912
        %v923 = vpop.f32.mrf.mxu0
        %v924 = vadd.f32 0.0, %v923
        %v925 = vpop.f32.mrf.mxu0
        %v926 = vadd.f32 0.0, %v925
        %927 = vdwg.mxu0
        %v928 = vmul.f32 %v924, 0.17677669
        %v929 = vmul.f32 %v926, 0.17677669
        %930 = vmax.xlane.f32.xlu0 %v928
        %v931 = vpop.xlane.xlu0 %930
        %932 = vmax.xlane.f32.xlu0 %v929
        %v933 = vpop.xlane.xlu0 %932
        %v934 = vsub.f32 %v928, %v931
        %v935 = vsub.f32 %v929, %v933
        %v936 = vmul.f32 %v934, 1.442695
        %v937 = vpow.pop %v936
        %v938 = vmul.f32 %v935, 1.442695
        %v939 = vpow.pop %v938
        %940 = vadd.xlane.f32.xlu0 %v937
        %v941 = vpop.xlane.xlu0 %940
        %942 = vadd.xlane.f32.xlu0 %v939
        %v943 = vpop.xlane.xlu0 %942
        %v944 = vrcp.pop %v941
        %v945 = vrcp.pop %v943
        %v946 = vmul.f32 %v937, %v944
        %v947 = vmul.f32 %v939, %v945
        %v948 = vpack.c.bf16 %v947, %v946
        %v949 = vpack.c.bf16 %v883, %v881
        %v950 = vpack.c.bf16 %v888, %v886
        %951 = vmatpush.bf16.xpose.msra.mxu0 0
        %952 = vmatpush.bf16.xpose.msra.mxu0 0
        %953 = vmatpush.bf16.xpose.msra.mxu0 0
        %954 = vmatpush.bf16.xpose.msra.mxu0 0
        %955 = vmatpush.bf16.xpose.msra.mxu0 0
        %956 = vmatpush.bf16.xpose.msra.mxu0 0
        %957 = vmatpush.bf16.xpose.msra.mxu0 %v950
        %958 = vmatpush.bf16.xpose.msra.mxu0 %v949
        %959 = vmatmul.bf16.gmra.mxu0 %v948
        %v960 = vpop.f32.mrf.mxu0
        %v961 = vadd.f32 0.0, %v960
        %v962 = vpop.f32.mrf.mxu0
        %v963 = vadd.f32 0.0, %v962
        %964 = vdwg.mxu0
        %v965 = vpack.c.bf16 %v963, %v961
        %966 = vrot.lane.b32.xlu0 %v789, 32
        %v967 = vpop.permute.xlu0 %966
        %968 = vrot.lane.b32.xlu0 %v790, 32
        %v969 = vpop.permute.xlu0 %968
        %v973 = vsel %vm817, %v965, 0
        %975 = vmatpush.bf16.msra.mxu0 0
        %976 = vmatpush.bf16.msra.mxu0 0
        %977 = vmatpush.bf16.msra.mxu0 0
        %978 = vmatpush.bf16.msra.mxu0 0
        %979 = vmatpush.bf16.msra.mxu0 0
        %980 = vmatpush.bf16.msra.mxu0 0
        %981 = vmatpush.bf16.msra.mxu0 %v969
        %982 = vmatpush.bf16.msra.mxu0 %v967
        %983 = vmatmul.bf16.gmra.mxu0 %v973
        %v984 = vpop.f32.mrf.mxu0
        %v985 = vadd.f32 0.0, %v984
        %v986 = vpop.f32.mrf.mxu0
        %v987 = vadd.f32 0.0, %v986
        %988 = vdwg.mxu0
        %v989 = vadd.f32 %v714, %v985
        %v990 = vadd.f32 %v374, %v987
        %v991 = vsel %vm817, %v989, 0.0
        %992 = vadd.xlane.f32.xlu0 %v991
        %v993 = vpop.xlane.xlu0 %992
        %v994 = vsel %vm817, %v990, 0.0
        %995 = vadd.xlane.f32.xlu0 %v994
        %v996 = vpop.xlane.xlu0 %995
        %v997 = vrcp.pop 32.0
        %v998 = vmul.f32 32.0, %v997
        %v999 = vsub.f32 1.0, %v998
        %v1000 = vmul.f32 %v997, %v999
        %v1001 = vadd.f32 %v997, %v1000
        %vm1002 = vweird.f32 %v997
        %v1003 = vsel %vm1002, %v997, %v1001
        %v1004 = vmul.f32 %v993, %v1003
        %v1005 = vmul.f32 %v996, %v1003
        %v1006 = vsub.f32 %v989, %v1004
        %v1007 = vsub.f32 %v990, %v1005
        %v1008 = vmul.f32 %v1006, %v1006
        %v1009 = vmul.f32 %v1007, %v1007
        %v1010 = vsel %vm817, %v1008, 0.0
        %1011 = vadd.xlane.f32.xlu0 %v1010
        %v1012 = vpop.xlane.xlu0 %1011
        %v1013 = vsel %vm817, %v1009, 0.0
        %1014 = vadd.xlane.f32.xlu0 %v1013
        %v1015 = vpop.xlane.xlu0 %1014
        %v1016 = vmul.f32 %v1012, %v1003
        %v1017 = vmul.f32 %v1015, %v1003
        %v1018 = vadd.f32 %v1016, 1e-05
        %v1019 = vadd.f32 %v1017, 1e-05
        %v1020 = vrsqrt.pop %v1018
        %v1021 = vmul.f32 %v1020, %v1018
        %v1022 = vmul.f32 %v1021, %v1020
        %v1023 = vmul.f32 0.5, %v1022
        %v1024 = vsub.f32 1.5, %v1023
        %v1025 = vmul.f32 %v1020, %v1024
        %vm1026 = vweird.f32 %v1018
        %vm1027 = vweird.f32 %v1020
        %vm1028 = vmor %vm1026, %vm1027
        %v1029 = vsel %vm1028, %v1020, %v1025
        %v1030 = vrsqrt.pop %v1019
        %v1031 = vmul.f32 %v1030, %v1019
        %v1032 = vmul.f32 %v1031, %v1030
        %v1033 = vmul.f32 0.5, %v1032
        %v1034 = vsub.f32 1.5, %v1033
        %v1035 = vmul.f32 %v1030, %v1034
        %vm1036 = vweird.f32 %v1019
        %vm1037 = vweird.f32 %v1030
        %vm1038 = vmor %vm1036, %vm1037
        %v1039 = vsel %vm1038, %v1030, %v1035
        %v1040 = vmul.f32 %v1006, %v1029
        %v1041 = vmul.f32 %v1007, %v1039
        %v1042 = vperm.slane %v382, 0
        %v1043 = vmul.f32 %v1040, %v1042
        %v1044 = vmul.f32 %v1041, %v1042
        %v1045 = vperm.slane %v383, 0
        %v1046 = vadd.f32 %v1043, %v1045
        %v1047 = vadd.f32 %v1044, %v1045
        %v1048 = vpack.c.bf16 %v1047, %v1046
        %v1049 = vpack.c.bf16 %v355, %v354
        %v1050 = vpack.c.bf16 %v357, %v356
        %v1051 = vperm.slane %v378, 0
        %1054 = vrot.lane.b32.xlu0 %v1049, 96
        %v1055 = vpop.permute.xlu0 %1054
        %1056 = vrot.lane.b32.xlu0 %v1050, 96
        %v1057 = vpop.permute.xlu0 %1056
        %v1061 = vsel %vm817, %v1048, 0
        %1063 = vmatpush.bf16.msra.mxu0 0
        %1064 = vmatpush.bf16.msra.mxu0 0
        %1065 = vmatpush.bf16.msra.mxu0 0
        %1066 = vmatpush.bf16.msra.mxu0 0
        %1067 = vmatpush.bf16.msra.mxu0 0
        %1068 = vmatpush.bf16.msra.mxu0 0
        %1069 = vmatpush.bf16.msra.mxu0 %v1057
        %1070 = vmatpush.bf16.msra.mxu0 %v1055
        %1071 = vmatmul.bf16.gmra.mxu0 %v1061
        %v1072 = vpop.f32.mrf.mxu0
        %v1073 = vadd.f32 %v1051, %v1072
        %v1074 = vpop.f32.mrf.mxu0
        %v1075 = vadd.f32 %v1051, %v1074
        %1076 = vdwg.mxu0
        %v1077 = vmax.f32 %v1073, 0.0
        %v1078 = vmax.f32 %v1075, 0.0
        %v1079 = vpack.c.bf16 %v1078, %v1077
        %1080 = vrot.lane.b32.xlu0 %v589, 64
        %v1081 = vpop.permute.xlu0 %1080
        %1082 = vrot.lane.b32.xlu0 %v590, 64
        %v1083 = vpop.permute.xlu0 %1082
        %1084 = vrot.lane.b32.xlu0 %v591, 64
        %v1085 = vpop.permute.xlu0 %1084
        %1086 = vrot.lane.b32.xlu0 %v592, 64
        %v1087 = vpop.permute.xlu0 %1086
        %v1093 = vsel %vm633, %v1079, 0
        %1095 = vmatpush.bf16.msra.mxu0 0
        %1096 = vmatpush.bf16.msra.mxu0 0
        %1097 = vmatpush.bf16.msra.mxu0 0
        %1098 = vmatpush.bf16.msra.mxu0 0
        %1099 = vmatpush.bf16.msra.mxu0 %v1087
        %1100 = vmatpush.bf16.msra.mxu0 %v1085
        %1101 = vmatpush.bf16.msra.mxu0 %v1083
        %1102 = vmatpush.bf16.msra.mxu0 %v1081
        %1103 = vmatmul.bf16.gmra.mxu0 %v1093
        %v1104 = vpop.f32.mrf.mxu0
        %v1105 = vpop.f32.mrf.mxu0
        %v1106 = vadd.f32 0.0, %v1105
        %1107 = vdwg.mxu0
        %v1108 = vadd.f32 %v1047, %v1106
        %v1109 = vperm.slane %v379, 0
        %v1110 = vadd.f32 %v1108, %v1109
        %v1111 = vsel %vm817, %v1110, 0.0
        %1112 = vadd.xlane.f32.xlu0 %v1111
        %v1113 = vpop.xlane.xlu0 %1112
        %v1114 = vmul.f32 %v1113, %v1003
        %v1115 = vsub.f32 %v1110, %v1114
        %v1116 = vmul.f32 %v1115, %v1115
        %v1117 = vsel %vm817, %v1116, 0.0
        %1118 = vadd.xlane.f32.xlu0 %v1117
        %v1119 = vpop.xlane.xlu0 %1118
        %v1120 = vmul.f32 %v1119, %v1003
        %v1121 = vadd.f32 %v1120, 1e-05
        %v1122 = vrsqrt.pop %v1121
        %v1123 = vmul.f32 %v1122, %v1121
        %v1124 = vmul.f32 %v1123, %v1122
        %v1125 = vmul.f32 0.5, %v1124
        %v1126 = vsub.f32 1.5, %v1125
        %v1127 = vmul.f32 %v1122, %v1126
        %vm1128 = vweird.f32 %v1121
        %vm1129 = vweird.f32 %v1122
        %vm1130 = vmor %vm1128, %vm1129
        %v1131 = vsel %vm1130, %v1122, %v1127
        %v1132 = vmul.f32 %v1115, %v1131
        %v1133 = vperm.slane %v384, 0
        %v1134 = vmul.f32 %v1132, %v1133
        %v1135 = vperm.slane %v385, 0
        %v1136 = vadd.f32 %v1134, %v1135
        %v1137 = vpack.c.bf16 %v1136, %v1136
        %v1139 = vsel %vm817, %v1137, 0
        %1141 = vmatpush.bf16.msra.mxu0 0
        %1142 = vmatpush.bf16.msra.mxu0 0
        %1143 = vmatpush.bf16.msra.mxu0 0
        %1144 = vmatpush.bf16.msra.mxu0 0
        %1145 = vmatpush.bf16.msra.mxu0 0
        %1146 = vmatpush.bf16.msra.mxu0 0
        %1147 = vmatpush.bf16.msra.mxu0 %v1050
        %1148 = vmatpush.bf16.msra.mxu0 %v1049
        %1149 = vmatmul.bf16.gmra.mxu0 %v1139
        %v1150 = vpop.f32.mrf.mxu0
        %v1151 = vadd.f32 0.0, %v1150
        %v1152 = vpop.f32.mrf.mxu0
        %1153 = vdwg.mxu0
        %v1154 = vpack.c.bf16 %v1151, %v1151
        %v1156 = vsel %vm817, %v1154, 0
        %1158 = vmatpush.bf16.msra.mxu0 0
        %1159 = vmatpush.bf16.msra.mxu0 0
        %1160 = vmatpush.bf16.msra.mxu0 0
        %1161 = vmatpush.bf16.msra.mxu0 0
        %1162 = vmatpush.bf16.msra.mxu0 0
        %1163 = vmatpush.bf16.msra.mxu0 0
        %1164 = vmatpush.bf16.msra.mxu0 %v792
        %1165 = vmatpush.bf16.msra.mxu0 %v791
        %1166 = vmatmul.bf16.gmra.mxu0 %v1156
        %v1167 = vpop.f32.mrf.mxu0
        %v1168 = vadd.f32 0.0, %v1167
        %v1169 = vpop.f32.mrf.mxu0
        %1170 = vdwg.mxu0
        %v1172 = vrot.slane %v1137, 2
        %1173 = vrot.lane.b32.xlu0 %v1049, 32
        %v1174 = vpop.permute.xlu0 %1173
        %1175 = vrot.lane.b32.xlu0 %v1050, 32
        %v1176 = vpop.permute.xlu0 %1175
        %v1180 = vsel %vm817, %v1172, 0
        %1182 = vmatpush.bf16.msra.mxu0 0
        %1183 = vmatpush.bf16.msra.mxu0 0
        %1184 = vmatpush.bf16.msra.mxu0 0
        %1185 = vmatpush.bf16.msra.mxu0 0
        %1186 = vmatpush.bf16.msra.mxu0 0
        %1187 = vmatpush.bf16.msra.mxu0 0
        %1188 = vmatpush.bf16.msra.mxu0 %v1176
        %1189 = vmatpush.bf16.msra.mxu0 %v1174
        %1190 = vmatmul.bf16.gmra.mxu0 %v1180
        %v1191 = vpop.f32.mrf.mxu0
        %v1192 = vadd.f32 %v380, %v1191
        %v1193 = vpop.f32.mrf.mxu0
        %1194 = vdwg.mxu0
        %v1195 = vmax.f32 %v1192, 0.0
        %v1196 = vpack.c.bf16 %v1195, %v1195
        %v1197 = vpack.c.bf16 %v359, %v358
        %v1198 = vpack.c.bf16 %v361, %v360
        %v1200 = vsel %vm817, %v1196, 0
        %1202 = vmatpush.bf16.msra.mxu0 0
        %1203 = vmatpush.bf16.msra.mxu0 0
        %1204 = vmatpush.bf16.msra.mxu0 0
        %1205 = vmatpush.bf16.msra.mxu0 0
        %1206 = vmatpush.bf16.msra.mxu0 0
        %1207 = vmatpush.bf16.msra.mxu0 0
        %1208 = vmatpush.bf16.msra.mxu0 %v1198
        %1209 = vmatpush.bf16.msra.mxu0 %v1197
        %1210 = vmatmul.bf16.gmra.mxu0 %v1200
        %v1211 = vpop.f32.mrf.mxu0
        %v1212 = vadd.f32 %v381, %v1211
        %v1213 = vpop.f32.mrf.mxu0
        %1214 = vdwg.mxu0
        %1215 = vst [vmem:[%s312] sm:$0x1] %v1168
        %1216 = vst [vmem:[%s318] sm:$0x1] %v1212
        %s1217 = sand.u32 %s191, 1
        %s1218 = scalar_lea.sflag [#allocation3], %s1217
        %s1219 = sand.u32 %s191, 1
        %s1220 = scalar_lea.vmem [#allocation2], %s1219
        %s1221 = sand.u32 %s217, 1
        %s1222 = scalar_lea.sflag [#allocation5], %s1221
        %s1223 = sand.u32 %s217, 1
        %s1224 = scalar_lea.vmem [#allocation4], %s1223
        // Predicated region
        $region49: #{tpu_custom_call.1} parent=47 // pred_check
          %p1225 = pneg %p201
        $region50: #{tpu_custom_call.1} parent=47 // pred_check_branch
          %1227 = sbr.rel (%p1225) target = $region52
        $region51: #{tpu_custom_call.1} parent=47 // pred_region
          %1229 = vsyncadd %s1218, 0
          %s1230 = scalar_lea.hbm %s7, %s26
          %s1232 = sshll.u32 %s1220, 4
          %s1233 = int_to_ptr.vmem [resolvable:$true] %s1232
          %s1234 = sshll.u32 %s1230, 4
          %s1235 = int_to_ptr.hbm [resolvable:$true] %s1234
          %1237 = dma.vmem_to_hbm [thread:$0]  %s1233, 16, %s1235, %s1218
        $region52: #{tpu_custom_call.1} parent=47 // pred_fallthru
          _
        // Predicated region
        $region53: #{tpu_custom_call.1} parent=47 // pred_check
          %p1238 = pneg %p227
        $region54: #{tpu_custom_call.1} parent=47 // pred_check_branch
          %1240 = sbr.rel (%p1238) target = $region56
        $region55: #{tpu_custom_call.1} parent=47 // pred_region
          %1242 = vsyncadd %s1222, 0
          %s1243 = scalar_lea.hbm %s8, %s26
          %s1245 = sshll.u32 %s1224, 4
          %s1246 = int_to_ptr.vmem [resolvable:$true] %s1245
          %s1247 = sshll.u32 %s1243, 4
          %s1248 = int_to_ptr.hbm [resolvable:$true] %s1247
          %1250 = dma.vmem_to_hbm [thread:$0]  %s1246, 16, %s1248, %s1222
        $region56: #{tpu_custom_call.1} parent=47 // pred_fallthru
          _
      $region48: #{tpu_custom_call.1} parent=5 // pred_fallthru
        _
      %p1251 = scmp.le.s32.totalorder 2, %s21
      // Predicated region
      $region57: #{tpu_custom_call.1} parent=5 // pred_check
        %p1252 = pneg %p1251
      $region58: #{tpu_custom_call.1} parent=5 // pred_check_branch
        %1254 = sbr.rel (%p1252) target = $region60
      $region59: #{tpu_custom_call.1} parent=5 // pred_region
        %s1255 = ssub.s32 %s21, 2
        // Predicated region
        $region61: #{tpu_custom_call.1} parent=59 // pred_check
          %p1256 = pneg %p207
        $region62: #{tpu_custom_call.1} parent=59 // pred_check_branch
          %1258 = sbr.rel (%p1256) target = $region64
        $region63: #{tpu_custom_call.1} parent=59 // pred_region
          %s1259 = sand.u32 %s192, 1
          %s1260 = scalar_lea.sflag [#allocation3], %s1259
          %s1261 = sand.u32 %s192, 1
          %s1262 = scalar_lea.vmem [#allocation2], %s1261
          %1264 = dma.done %s1260, 16
        $region64: #{tpu_custom_call.1} parent=59 // pred_fallthru
          _
        // Predicated region
        $region65: #{tpu_custom_call.1} parent=59 // pred_check
          %p1265 = pneg %p233
        $region66: #{tpu_custom_call.1} parent=59 // pred_check_branch
          %1267 = sbr.rel (%p1265) target = $region68
        $region67: #{tpu_custom_call.1} parent=59 // pred_region
          %s1268 = sand.u32 %s218, 1
          %s1269 = scalar_lea.sflag [#allocation5], %s1268
          %s1270 = sand.u32 %s218, 1
          %s1271 = scalar_lea.vmem [#allocation4], %s1270
          %1273 = dma.done %s1269, 16
        $region68: #{tpu_custom_call.1} parent=59 // pred_fallthru
          _
      $region60: #{tpu_custom_call.1} parent=5 // pred_fallthru
        _
    $region6: #{tpu_custom_call.1} parent=1 // loop_footer
      %s25 = sadd.s32 1, %s21
    $region7: #{tpu_custom_call.1} parent=1 // loop_footer_branch
      %20 = sbr.rel target = $region3
    $region8: #{tpu_custom_call.1} parent=1 // loop_exit
      _
    %1274 = vsyncpa [#allocation3], 1
    %s1275 = scalar_lea.sflag [#allocation3], 1
    %1276 = vsyncpa %s1275, 1
    %1277 = vsyncpa [#allocation5], 1
    %s1278 = scalar_lea.sflag [#allocation5], 1
    %1279 = vsyncpa %s1278, 1

</llo_original>
